<compile_context>
chip_gen: v5e
topology: v5e:2x2
jax: 0.10.0
libtpu: 0.0.40
codegen_flags: <defaults>
</compile_context>

<pallas_src>
import math

import jax
import jax.numpy as jnp
import numpy as np
from jax import lax
from jax.experimental import pallas as pl
from jax.experimental.pallas import tpu as pltpu


# ---------------------------------------------------------------------------
# Fused kernel: one (batch, Lq-tile) grid point, all heads, real & phase,
# including the output projection.
# ---------------------------------------------------------------------------
def _make_kernel(n_head, d_k, d_v, tq, inv_scale, cache_kv):
    f32 = jnp.float32
    bf16 = jnp.bfloat16
    dn = (((1,), (1,)), ((), ()))  # contract feature dim of both operands (no .T)

    def kernel(q_ref, k_ref, v_ref, wq_ref, wk_ref, wv_ref, wo_ref,
               out_r_ref, out_p_ref, kproj_ref, vproj_ref, ctx_ref):
        # ---- K/V projections (depend only on the batch axis). Cached in VMEM
        # scratch and recomputed only on the first Lq tile of each batch
        # element when the tile axis is sequential ("arbitrary").
        def project_kv():
            kproj_ref[0] = jnp.dot(k_ref[0, 0], wk_ref[...],
                                   preferred_element_type=f32).astype(bf16)
            kproj_ref[1] = jnp.dot(k_ref[0, 1], wk_ref[...],
                                   preferred_element_type=f32).astype(bf16)
            vproj_ref[0] = jnp.dot(v_ref[0, 0], wv_ref[...],
                                   preferred_element_type=f32).astype(bf16)
            vproj_ref[1] = jnp.dot(v_ref[0, 1], wv_ref[...],
                                   preferred_element_type=f32).astype(bf16)

        if cache_kv:
            pl.when(pl.program_id(1) == 0)(project_kv)
        else:
            project_kv()

        k_r = kproj_ref[0]          # [Lk, H*dk] bf16
        k_p = kproj_ref[1]
        v_r = vproj_ref[0]          # [Lk, H*dv] bf16
        v_p = vproj_ref[1]

        # ---- Q projections for this Lq tile (downcast immediately; the f32
        # results are not kept live).
        q_r = jnp.dot(q_ref[0, 0], wq_ref[...], preferred_element_type=f32).astype(bf16)
        q_p = jnp.dot(q_ref[0, 1], wq_ref[...], preferred_element_type=f32).astype(bf16)

        for h in range(n_head):
            c0, c1 = h * d_k, (h + 1) * d_k
            qr_h, qp_h = q_r[:, c0:c1], q_p[:, c0:c1]
            kr_h, kp_h = k_r[:, c0:c1], k_p[:, c0:c1]

            # Complex scores: a_r = QrKr^T - QpKp^T, a_p = QrKp^T + QpKr^T.
            s_rr = lax.dot_general(qr_h, kr_h, dn, preferred_element_type=f32)
            s_pp = lax.dot_general(qp_h, kp_h, dn, preferred_element_type=f32)
            s_rp = lax.dot_general(qr_h, kp_h, dn, preferred_element_type=f32)
            s_pr = lax.dot_general(qp_h, kr_h, dn, preferred_element_type=f32)
            a_r = s_rr - s_pp
            a_p = s_rp + s_pr

            # continue_complex=False branch: magnitude, scale, softmax (f32 VPU/EUP).
            attn = jnp.sqrt(a_r * a_r + a_p * a_p) * inv_scale
            m = jnp.max(attn, axis=-1, keepdims=True)
            e = jnp.exp(attn - m)
            p = e * pl.reciprocal(jnp.sum(e, axis=-1, keepdims=True), approx=True)
            p_b = p.astype(bf16)    # attn_drop(p=0.0) is identity

            g0, g1 = h * d_v, (h + 1) * d_v
            o_r = jnp.dot(p_b, v_r[:, g0:g1], preferred_element_type=f32)   # [TQ, dv]
            o_p = jnp.dot(p_b, v_p[:, g0:g1], preferred_element_type=f32)

            # Row-stacked context scratch [real rows ; phase rows]: bounds live
            # state to the current head and removes the old 2H-way concatenate.
            ctx_ref[:tq, g0:g1] = o_r.astype(bf16)
            ctx_ref[tq:, g0:g1] = o_p.astype(bf16)

        # ---- Single output projection against w_o.T for real AND phase rows.
        y = jnp.dot(ctx_ref[...], wo_ref[...], preferred_element_type=f32)   # [2TQ, D]
        out_r_ref[0] = y[:tq].astype(out_r_ref.dtype)
        out_p_ref[0] = y[tq:].astype(out_p_ref.dtype)

    return kernel


# ---------------------------------------------------------------------------
# Helpers
# ---------------------------------------------------------------------------
def _pick_q_tile(lq, max_tile=256):
    """Largest Lq tile <= max_tile that keeps the (8,128) block rules happy."""
    if lq <= max_tile:
        return lq
    for t in range(max_tile, 7, -1):
        if lq % t == 0 and t % 8 == 0:
            return t
    return lq


def _physical_vmem_bytes():
    try:
        return int(pltpu.get_tpu_info().vmem_capacity_bytes)
    except Exception:
        return 64 * 1024 * 1024     # conservative (v7x per-TC VMEM)


# ---------------------------------------------------------------------------
# Full MultiHeadAttention forward (continue_complex=False, mask=None)
# ---------------------------------------------------------------------------
def multi_head_attention(x_real, x_phase, params, n_head):
    q_r, k_r, v_r = x_real
    q_p, k_p, v_p = x_phase
    w_q, w_k, w_v, w_o = params

    B, Lq, d_model = q_r.shape
    Lk = k_r.shape[1]
    d_k = d_model // n_head                 # module: self.d_k = d_model // n_head
    d_v = w_v.shape[0] // n_head
    hdk = n_head * d_k
    hdv = n_head * d_v
    inv_scale = 1.0 / float((d_k * 2) ** 0.5)

    bf16 = jnp.bfloat16
    # Stack real / phase on a small leading axis (not rows), so Lq tiling stays
    # expressible with rectangular blocks; bf16 halves input DMA bytes.
    q_cat = jnp.stack([q_r, q_p], axis=1).astype(bf16)   # [B, 2, Lq, D]
    k_cat = jnp.stack([k_r, k_p], axis=1).astype(bf16)   # [B, 2, Lk, D]
    v_cat = jnp.stack([v_r, v_p], axis=1).astype(bf16)   # [B, 2, Lk, D]

    # Pre-transposed weights (no in-kernel .T); plain w_o.T (no block-diag).
    wq_t = w_q.T.astype(bf16)               # [D, H*dk]
    wk_t = w_k.T.astype(bf16)               # [D, H*dk]
    wv_t = w_v.T.astype(bf16)               # [D, H*dv]
    wo_t = w_o.T.astype(bf16)               # [H*dv, D]

    tq = _pick_q_tile(Lq)
    n_tq = Lq // tq

    if n_tq > 1 and B == 1:
        # No batch parallelism available: give the Lq-tile axis to megacore
        # (v7x) and recompute K/V projections per tile.
        cache_kv = False
        dim_sem = ("parallel", "parallel")
    else:
        cache_kv = True
        dim_sem = ("parallel", "arbitrary")

    # Rough VMEM budget: double-buffered blocks + weights + scratch + temps.
    bf, f4 = 2, 4
    est = (
        2 * (2 * tq * d_model) * bf                              # q block
        + 2 * 2 * (2 * Lk * d_model) * bf                        # k + v blocks
        + 2 * (2 * d_model * hdk + d_model * hdv + hdv * d_model) * bf   # weights
        + (2 * Lk * hdk + 2 * Lk * hdv + 2 * tq * hdv) * bf      # scratch
        + 2 * tq * hdk * bf                                      # q projections
        + 7 * tq * Lk * f4                                       # score/softmax temps
        + 2 * tq * d_model * f4                                  # out-proj result
        + 2 * 2 * (tq * d_model) * f4                            # two f32 out blocks
    )
    vmem_limit = int(min(max(int(est * 1.5), 32 * 1024 * 1024),
                         int(0.9 * _physical_vmem_bytes())))

    kernel = _make_kernel(n_head, d_k, d_v, tq, inv_scale, cache_kv)
    out_r, out_p = pl.pallas_call(
        kernel,
        out_shape=(jax.ShapeDtypeStruct((B, Lq, d_model), jnp.float32),
                   jax.ShapeDtypeStruct((B, Lq, d_model), jnp.float32)),
        grid_spec=pltpu.PrefetchScalarGridSpec(
            num_scalar_prefetch=0,
            grid=(B, n_tq),
            in_specs=[
                pl.BlockSpec((1, 2, tq, d_model), lambda b, t: (b, 0, t, 0)),
                pl.BlockSpec((1, 2, Lk, d_model), lambda b, t: (b, 0, 0, 0)),
                pl.BlockSpec((1, 2, Lk, d_model), lambda b, t: (b, 0, 0, 0)),
                pl.BlockSpec((d_model, hdk), lambda b, t: (0, 0)),
                pl.BlockSpec((d_model, hdk), lambda b, t: (0, 0)),
                pl.BlockSpec((d_model, hdv), lambda b, t: (0, 0)),
                pl.BlockSpec((hdv, d_model), lambda b, t: (0, 0)),
            ],
            out_specs=[
                pl.BlockSpec((1, tq, d_model), lambda b, t: (b, t, 0)),
                pl.BlockSpec((1, tq, d_model), lambda b, t: (b, t, 0)),
            ],
            scratch_shapes=[
                pltpu.VMEM((2, Lk, hdk), bf16),      # cached K projections (real/phase)
                pltpu.VMEM((2, Lk, hdv), bf16),      # cached V projections (real/phase)
                pltpu.VMEM((2 * tq, hdv), bf16),     # row-stacked per-head contexts
            ],
        ),
        compiler_params=pltpu.CompilerParams(
            dimension_semantics=dim_sem,
            vmem_limit_bytes=vmem_limit),
    )(q_cat, k_cat, v_cat, wq_t, wk_t, wv_t, wo_t)

    return out_r, out_p


# ---------------------------------------------------------------------------
# Pure-JAX reference (mirrors the PyTorch module) for verification
# ---------------------------------------------------------------------------
def reference(x_real, x_phase, params, n_head):
    q_r, k_r, v_r = x_real
    q_p, k_p, v_p = x_phase
    w_q, w_k, w_v, w_o = params
    B, Lq, d_model = q_r.shape
    d_k = d_model // n_head
    d_v = w_v.shape[0] // n_head
    scale = (d_k * 2) ** 0.5

    def proj(x, W, d):
        return (x @ W.T).reshape(B, -1, n_head, d).transpose(0, 2, 1, 3)

    Qr, Kr, Vr = proj(q_r, w_q, d_k), proj(k_r, w_k, d_k), proj(v_r, w_v, d_v)
    Qp, Kp, Vp = proj(q_p, w_q, d_k), proj(k_p, w_k, d_k), proj(v_p, w_v, d_v)

    a_r = Qr @ Kr.transpose(0, 1, 3, 2) - Qp @ Kp.transpose(0, 1, 3, 2)
    a_p = Qr @ Kp.transpose(0, 1, 3, 2) + Qp @ Kr.transpose(0, 1, 3, 2)
    attn = jnp.sqrt(a_r * a_r + a_p * a_p) / scale
    attn = jax.nn.softmax(attn, axis=-1)
    xr = (attn @ Vr).transpose(0, 2, 1, 3).reshape(B, Lq, n_head * d_v)
    xp = (attn @ Vp).transpose(0, 2, 1, 3).reshape(B, Lq, n_head * d_v)
    return xr @ w_o.T, xp @ w_o.T


if __name__ == "__main__":
    # Small config consistent with the module: d_model=32, n_head=4 -> d_k=8, d_v=8
    B, L, d_model, n_head = 2, 8, 32, 4
    d_k = d_model // n_head
    d_v = 8

    key = jax.random.PRNGKey(0)
    keys = jax.random.split(key, 10)

    def linear_init(k, out_f, in_f):
        bound = 1.0 / math.sqrt(in_f)
        return jax.random.uniform(k, (out_f, in_f), jnp.float32, -bound, bound)

    w_q = linear_init(keys[0], n_head * d_k, d_model)
    w_k = linear_init(keys[1], n_head * d_k, d_model)
    w_v = linear_init(keys[2], n_head * d_v, d_model)
    w_o = linear_init(keys[3], d_model, n_head * d_v)
    params = (w_q, w_k, w_v, w_o)

    q_r = jax.random.normal(keys[4], (B, L, d_model), jnp.float32)
    k_r = jax.random.normal(keys[5], (B, L, d_model), jnp.float32)
    v_r = jax.random.normal(keys[6], (B, L, d_model), jnp.float32)
    q_p = jax.random.normal(keys[7], (B, L, d_model), jnp.float32)
    k_p = jax.random.normal(keys[8], (B, L, d_model), jnp.float32)
    v_p = jax.random.normal(keys[9], (B, L, d_model), jnp.float32)

    x_real = (q_r, k_r, v_r)
    x_phase = (q_p, k_p, v_p)

    yr, yp = multi_head_attention(x_real, x_phase, params, n_head)
    yr = jax.block_until_ready(yr)
    yp = jax.block_until_ready(yp)

    yr_ref, yp_ref = reference(x_real, x_phase, params, n_head)
    # Tolerance accounts for bf16 MXU operands (f32 accumulation) and the
    # approximate softmax reciprocal vs the f32 reference.
    np.testing.assert_allclose(np.asarray(yr), np.asarray(yr_ref), rtol=5e-2, atol=5e-2)
    np.testing.assert_allclose(np.asarray(yp), np.asarray(yp_ref), rtol=5e-2, atol=5e-2)

    print("KERNEL_OK")
</pallas_src>

<mosaic_0001>
module attributes {stable_mosaic.version = 11 : i64} {
  func.func @kernel(%arg0: i32, %arg1: i32, %arg2: memref<1x2x8x32xbf16, #tpu.memory_space<vmem>>, %arg3: memref<1x2x8x32xbf16, #tpu.memory_space<vmem>>, %arg4: memref<1x2x8x32xbf16, #tpu.memory_space<vmem>>, %arg5: memref<32x32xbf16, #tpu.memory_space<vmem>>, %arg6: memref<32x32xbf16, #tpu.memory_space<vmem>>, %arg7: memref<32x32xbf16, #tpu.memory_space<vmem>>, %arg8: memref<32x32xbf16, #tpu.memory_space<vmem>>, %arg9: memref<1x8x32xf32, #tpu.memory_space<vmem>>, %arg10: memref<1x8x32xf32, #tpu.memory_space<vmem>>, %arg11: memref<2x8x32xbf16, #tpu.memory_space<vmem>>, %arg12: memref<2x8x32xbf16, #tpu.memory_space<vmem>>, %arg13: memref<16x32xbf16, #tpu.memory_space<vmem>>) attributes {dimension_semantics = [#tpu.dimension_semantics<parallel>, #tpu.dimension_semantics<arbitrary>], iteration_bounds = array<i64: 2, 1>, scalar_prefetch = 0 : i64, scratch_operands = 3 : i64, tpu.core_type = #tpu.core_type<tc>, window_params = [{transform_indices = @transform_0, window_bounds = array<i64: 1, 2, 8, 32>}, {transform_indices = @transform_1, window_bounds = array<i64: 1, 2, 8, 32>}, {transform_indices = @transform_2, window_bounds = array<i64: 1, 2, 8, 32>}, {pipeline_mode = #tpu.pipeline_mode<synchronous>, transform_indices = @transform_3, window_bounds = array<i64: 32, 32>}, {pipeline_mode = #tpu.pipeline_mode<synchronous>, transform_indices = @transform_4, window_bounds = array<i64: 32, 32>}, {pipeline_mode = #tpu.pipeline_mode<synchronous>, transform_indices = @transform_5, window_bounds = array<i64: 32, 32>}, {pipeline_mode = #tpu.pipeline_mode<synchronous>, transform_indices = @transform_6, window_bounds = array<i64: 32, 32>}, {transform_indices = @transform_7, window_bounds = array<i64: 1, 8, 32>}, {transform_indices = @transform_8, window_bounds = array<i64: 1, 8, 32>}]} {
    %c0_i32 = arith.constant 0 : i32
    %0 = arith.cmpi eq, %arg1, %c0_i32 : i32
    %1 = arith.extui %0 : i1 to i32
    %c0_i32_0 = arith.constant 0 : i32
    %2 = arith.cmpi ne, %1, %c0_i32_0 : i32
    scf.if %2 {
      %c0_84 = arith.constant 0 : index
      %c0_85 = arith.constant 0 : index
      %c0_86 = arith.constant 0 : index
      %c0_87 = arith.constant 0 : index
      %172 = vector.load %arg3[%c0_84, %c0_85, %c0_86, %c0_87] : memref<1x2x8x32xbf16, #tpu.memory_space<vmem>>, vector<1x1x8x32xbf16>
      %173 = vector.shape_cast %172 : vector<1x1x8x32xbf16> to vector<8x32xbf16>
      %c0_88 = arith.constant 0 : index
      %c0_89 = arith.constant 0 : index
      %174 = vector.load %arg6[%c0_88, %c0_89] : memref<32x32xbf16, #tpu.memory_space<vmem>>, vector<32x32xbf16>
      %cst_90 = arith.constant dense<0.000000e+00> : vector<8x32xf32>
      %175 = tpu.matmul %173, %174, %cst_90 {dimension_numbers = #tpu.dot_dimension_numbers<[1], [0], [0], [1], [0, 0, 1, 1], [], []>} : vector<8x32xbf16>, vector<32x32xbf16>, vector<8x32xf32> -> vector<8x32xf32>
      %176 = arith.truncf %175 : vector<8x32xf32> to vector<8x32xbf16>
      %c0_91 = arith.constant 0 : index
      %c0_92 = arith.constant 0 : index
      %c0_93 = arith.constant 0 : index
      %177 = vector.load %arg11[%c0_91, %c0_92, %c0_93] : memref<2x8x32xbf16, #tpu.memory_space<vmem>>, vector<1x8x32xbf16>
      %178 = vector.shape_cast %177 : vector<1x8x32xbf16> to vector<8x32xbf16>
      %179 = vector.shape_cast %176 : vector<8x32xbf16> to vector<1x8x32xbf16>
      tpu.vector_store %arg11[%c0_91, %c0_92, %c0_93], %179 {strides = array<i32>} : memref<2x8x32xbf16, #tpu.memory_space<vmem>>, vector<1x8x32xbf16>,
      %c0_94 = arith.constant 0 : index
      %c1_95 = arith.constant 1 : index
      %c0_96 = arith.constant 0 : index
      %c0_97 = arith.constant 0 : index
      %180 = vector.load %arg3[%c0_94, %c1_95, %c0_96, %c0_97] : memref<1x2x8x32xbf16, #tpu.memory_space<vmem>>, vector<1x1x8x32xbf16>
      %181 = vector.shape_cast %180 : vector<1x1x8x32xbf16> to vector<8x32xbf16>
      %c0_98 = arith.constant 0 : index
      %c0_99 = arith.constant 0 : index
      %182 = vector.load %arg6[%c0_98, %c0_99] : memref<32x32xbf16, #tpu.memory_space<vmem>>, vector<32x32xbf16>
      %cst_100 = arith.constant dense<0.000000e+00> : vector<8x32xf32>
      %183 = tpu.matmul %181, %182, %cst_100 {dimension_numbers = #tpu.dot_dimension_numbers<[1], [0], [0], [1], [0, 0, 1, 1], [], []>} : vector<8x32xbf16>, vector<32x32xbf16>, vector<8x32xf32> -> vector<8x32xf32>
      %184 = arith.truncf %183 : vector<8x32xf32> to vector<8x32xbf16>
      %c1_101 = arith.constant 1 : index
      %c0_102 = arith.constant 0 : index
      %c0_103 = arith.constant 0 : index
      %185 = vector.load %arg11[%c1_101, %c0_102, %c0_103] : memref<2x8x32xbf16, #tpu.memory_space<vmem>>, vector<1x8x32xbf16>
      %186 = vector.shape_cast %185 : vector<1x8x32xbf16> to vector<8x32xbf16>
      %187 = vector.shape_cast %184 : vector<8x32xbf16> to vector<1x8x32xbf16>
      tpu.vector_store %arg11[%c1_101, %c0_102, %c0_103], %187 {strides = array<i32>} : memref<2x8x32xbf16, #tpu.memory_space<vmem>>, vector<1x8x32xbf16>,
      %c0_104 = arith.constant 0 : index
      %c0_105 = arith.constant 0 : index
      %c0_106 = arith.constant 0 : index
      %c0_107 = arith.constant 0 : index
      %188 = vector.load %arg4[%c0_104, %c0_105, %c0_106, %c0_107] : memref<1x2x8x32xbf16, #tpu.memory_space<vmem>>, vector<1x1x8x32xbf16>
      %189 = vector.shape_cast %188 : vector<1x1x8x32xbf16> to vector<8x32xbf16>
      %c0_108 = arith.constant 0 : index
      %c0_109 = arith.constant 0 : index
      %190 = vector.load %arg7[%c0_108, %c0_109] : memref<32x32xbf16, #tpu.memory_space<vmem>>, vector<32x32xbf16>
      %cst_110 = arith.constant dense<0.000000e+00> : vector<8x32xf32>
      %191 = tpu.matmul %189, %190, %cst_110 {dimension_numbers = #tpu.dot_dimension_numbers<[1], [0], [0], [1], [0, 0, 1, 1], [], []>} : vector<8x32xbf16>, vector<32x32xbf16>, vector<8x32xf32> -> vector<8x32xf32>
      %192 = arith.truncf %191 : vector<8x32xf32> to vector<8x32xbf16>
      %c0_111 = arith.constant 0 : index
      %c0_112 = arith.constant 0 : index
      %c0_113 = arith.constant 0 : index
      %193 = vector.load %arg12[%c0_111, %c0_112, %c0_113] : memref<2x8x32xbf16, #tpu.memory_space<vmem>>, vector<1x8x32xbf16>
      %194 = vector.shape_cast %193 : vector<1x8x32xbf16> to vector<8x32xbf16>
      %195 = vector.shape_cast %192 : vector<8x32xbf16> to vector<1x8x32xbf16>
      tpu.vector_store %arg12[%c0_111, %c0_112, %c0_113], %195 {strides = array<i32>} : memref<2x8x32xbf16, #tpu.memory_space<vmem>>, vector<1x8x32xbf16>,
      %c0_114 = arith.constant 0 : index
      %c1_115 = arith.constant 1 : index
      %c0_116 = arith.constant 0 : index
      %c0_117 = arith.constant 0 : index
      %196 = vector.load %arg4[%c0_114, %c1_115, %c0_116, %c0_117] : memref<1x2x8x32xbf16, #tpu.memory_space<vmem>>, vector<1x1x8x32xbf16>
      %197 = vector.shape_cast %196 : vector<1x1x8x32xbf16> to vector<8x32xbf16>
      %c0_118 = arith.constant 0 : index
      %c0_119 = arith.constant 0 : index
      %198 = vector.load %arg7[%c0_118, %c0_119] : memref<32x32xbf16, #tpu.memory_space<vmem>>, vector<32x32xbf16>
      %cst_120 = arith.constant dense<0.000000e+00> : vector<8x32xf32>
      %199 = tpu.matmul %197, %198, %cst_120 {dimension_numbers = #tpu.dot_dimension_numbers<[1], [0], [0], [1], [0, 0, 1, 1], [], []>} : vector<8x32xbf16>, vector<32x32xbf16>, vector<8x32xf32> -> vector<8x32xf32>
      %200 = arith.truncf %199 : vector<8x32xf32> to vector<8x32xbf16>
      %c1_121 = arith.constant 1 : index
      %c0_122 = arith.constant 0 : index
      %c0_123 = arith.constant 0 : index
      %201 = vector.load %arg12[%c1_121, %c0_122, %c0_123] : memref<2x8x32xbf16, #tpu.memory_space<vmem>>, vector<1x8x32xbf16>
      %202 = vector.shape_cast %201 : vector<1x8x32xbf16> to vector<8x32xbf16>
      %203 = vector.shape_cast %200 : vector<8x32xbf16> to vector<1x8x32xbf16>
      tpu.vector_store %arg12[%c1_121, %c0_122, %c0_123], %203 {strides = array<i32>} : memref<2x8x32xbf16, #tpu.memory_space<vmem>>, vector<1x8x32xbf16>,
    } else {
    }
    %c0 = arith.constant 0 : index
    %c0_1 = arith.constant 0 : index
    %c0_2 = arith.constant 0 : index
    %3 = vector.load %arg11[%c0, %c0_1, %c0_2] : memref<2x8x32xbf16, #tpu.memory_space<vmem>>, vector<1x8x32xbf16>
    %4 = vector.shape_cast %3 : vector<1x8x32xbf16> to vector<8x32xbf16>
    %c1 = arith.constant 1 : index
    %c0_3 = arith.constant 0 : index
    %c0_4 = arith.constant 0 : index
    %5 = vector.load %arg11[%c1, %c0_3, %c0_4] : memref<2x8x32xbf16, #tpu.memory_space<vmem>>, vector<1x8x32xbf16>
    %6 = vector.shape_cast %5 : vector<1x8x32xbf16> to vector<8x32xbf16>
    %c0_5 = arith.constant 0 : index
    %c0_6 = arith.constant 0 : index
    %c0_7 = arith.constant 0 : index
    %7 = vector.load %arg12[%c0_5, %c0_6, %c0_7] : memref<2x8x32xbf16, #tpu.memory_space<vmem>>, vector<1x8x32xbf16>
    %8 = vector.shape_cast %7 : vector<1x8x32xbf16> to vector<8x32xbf16>
    %c1_8 = arith.constant 1 : index
    %c0_9 = arith.constant 0 : index
    %c0_10 = arith.constant 0 : index
    %9 = vector.load %arg12[%c1_8, %c0_9, %c0_10] : memref<2x8x32xbf16, #tpu.memory_space<vmem>>, vector<1x8x32xbf16>
    %10 = vector.shape_cast %9 : vector<1x8x32xbf16> to vector<8x32xbf16>
    %c0_11 = arith.constant 0 : index
    %c0_12 = arith.constant 0 : index
    %c0_13 = arith.constant 0 : index
    %c0_14 = arith.constant 0 : index
    %11 = vector.load %arg2[%c0_11, %c0_12, %c0_13, %c0_14] : memref<1x2x8x32xbf16, #tpu.memory_space<vmem>>, vector<1x1x8x32xbf16>
    %12 = vector.shape_cast %11 : vector<1x1x8x32xbf16> to vector<8x32xbf16>
    %c0_15 = arith.constant 0 : index
    %c0_16 = arith.constant 0 : index
    %13 = vector.load %arg5[%c0_15, %c0_16] : memref<32x32xbf16, #tpu.memory_space<vmem>>, vector<32x32xbf16>
    %cst = arith.constant dense<0.000000e+00> : vector<8x32xf32>
    %14 = tpu.matmul %12, %13, %cst {dimension_numbers = #tpu.dot_dimension_numbers<[1], [0], [0], [1], [0, 0, 1, 1], [], []>} : vector<8x32xbf16>, vector<32x32xbf16>, vector<8x32xf32> -> vector<8x32xf32>
    %15 = arith.truncf %14 : vector<8x32xf32> to vector<8x32xbf16>
    %c0_17 = arith.constant 0 : index
    %c1_18 = arith.constant 1 : index
    %c0_19 = arith.constant 0 : index
    %c0_20 = arith.constant 0 : index
    %16 = vector.load %arg2[%c0_17, %c1_18, %c0_19, %c0_20] : memref<1x2x8x32xbf16, #tpu.memory_space<vmem>>, vector<1x1x8x32xbf16>
    %17 = vector.shape_cast %16 : vector<1x1x8x32xbf16> to vector<8x32xbf16>
    %c0_21 = arith.constant 0 : index
    %c0_22 = arith.constant 0 : index
    %18 = vector.load %arg5[%c0_21, %c0_22] : memref<32x32xbf16, #tpu.memory_space<vmem>>, vector<32x32xbf16>
    %cst_23 = arith.constant dense<0.000000e+00> : vector<8x32xf32>
    %19 = tpu.matmul %17, %18, %cst_23 {dimension_numbers = #tpu.dot_dimension_numbers<[1], [0], [0], [1], [0, 0, 1, 1], [], []>} : vector<8x32xbf16>, vector<32x32xbf16>, vector<8x32xf32> -> vector<8x32xf32>
    %20 = arith.truncf %19 : vector<8x32xf32> to vector<8x32xbf16>
    %21 = vector.extract_strided_slice %15 {offsets = [0, 0], sizes = [8, 8], strides = [1, 1]} : vector<8x32xbf16> to vector<8x8xbf16>
    %22 = vector.extract_strided_slice %20 {offsets = [0, 0], sizes = [8, 8], strides = [1, 1]} : vector<8x32xbf16> to vector<8x8xbf16>
    %23 = vector.extract_strided_slice %4 {offsets = [0, 0], sizes = [8, 8], strides = [1, 1]} : vector<8x32xbf16> to vector<8x8xbf16>
    %24 = vector.extract_strided_slice %6 {offsets = [0, 0], sizes = [8, 8], strides = [1, 1]} : vector<8x32xbf16> to vector<8x8xbf16>
    %cst_24 = arith.constant dense<0.000000e+00> : vector<8x8xf32>
    %25 = tpu.matmul %21, %23, %cst_24 {dimension_numbers = #tpu.dot_dimension_numbers<[1], [1], [0], [0], [0, 0, 1, 0], [], []>} : vector<8x8xbf16>, vector<8x8xbf16>, vector<8x8xf32> -> vector<8x8xf32>
    %cst_25 = arith.constant dense<0.000000e+00> : vector<8x8xf32>
    %26 = tpu.matmul %22, %24, %cst_25 {dimension_numbers = #tpu.dot_dimension_numbers<[1], [1], [0], [0], [0, 0, 1, 0], [], []>} : vector<8x8xbf16>, vector<8x8xbf16>, vector<8x8xf32> -> vector<8x8xf32>
    %cst_26 = arith.constant dense<0.000000e+00> : vector<8x8xf32>
    %27 = tpu.matmul %21, %24, %cst_26 {dimension_numbers = #tpu.dot_dimension_numbers<[1], [1], [0], [0], [0, 0, 1, 0], [], []>} : vector<8x8xbf16>, vector<8x8xbf16>, vector<8x8xf32> -> vector<8x8xf32>
    %cst_27 = arith.constant dense<0.000000e+00> : vector<8x8xf32>
    %28 = tpu.matmul %22, %23, %cst_27 {dimension_numbers = #tpu.dot_dimension_numbers<[1], [1], [0], [0], [0, 0, 1, 0], [], []>} : vector<8x8xbf16>, vector<8x8xbf16>, vector<8x8xf32> -> vector<8x8xf32>
    %29 = arith.subf %25, %26 : vector<8x8xf32>
    %30 = arith.addf %27, %28 : vector<8x8xf32>
    %31 = arith.mulf %29, %29 : vector<8x8xf32>
    %32 = arith.mulf %30, %30 : vector<8x8xf32>
    %33 = arith.addf %31, %32 : vector<8x8xf32>
    %34 = math.sqrt %33 : vector<8x8xf32>
    %cst_28 = arith.constant 2.500000e-01 : f32
    %35 = vector.broadcast %cst_28 : f32 to vector<8x8xf32>
    %36 = arith.mulf %34, %35 : vector<8x8xf32>
    %cst_29 = arith.constant dense<0xFF800000> : vector<8xf32>
    %37 = vector.multi_reduction <maximumf>, %36, %cst_29 [1] : vector<8x8xf32> to vector<8xf32>
    %38 = vector.shape_cast %37 : vector<8xf32> to vector<8x1xf32>
    %39 = vector.broadcast %38 : vector<8x1xf32> to vector<8x8xf32>
    %40 = arith.subf %36, %39 : vector<8x8xf32>
    %41 = math.exp %40 : vector<8x8xf32>
    %cst_30 = arith.constant dense<0.000000e+00> : vector<8xf32>
    %42 = vector.multi_reduction <add>, %41, %cst_30 [1] : vector<8x8xf32> to vector<8xf32>
    %43 = vector.shape_cast %42 : vector<8xf32> to vector<8x1xf32>
    %44 = tpu.reciprocal %43 {approx = true} : vector<8x1xf32> -> vector<8x1xf32>
    %45 = vector.broadcast %44 : vector<8x1xf32> to vector<8x8xf32>
    %46 = arith.mulf %41, %45 : vector<8x8xf32>
    %47 = arith.truncf %46 : vector<8x8xf32> to vector<8x8xbf16>
    %48 = vector.extract_strided_slice %8 {offsets = [0, 0], sizes = [8, 8], strides = [1, 1]} : vector<8x32xbf16> to vector<8x8xbf16>
    %cst_31 = arith.constant dense<0.000000e+00> : vector<8x8xf32>
    %49 = tpu.matmul %47, %48, %cst_31 {dimension_numbers = #tpu.dot_dimension_numbers<[1], [0], [0], [1], [0, 0, 1, 1], [], []>} : vector<8x8xbf16>, vector<8x8xbf16>, vector<8x8xf32> -> vector<8x8xf32>
    %50 = vector.extract_strided_slice %10 {offsets = [0, 0], sizes = [8, 8], strides = [1, 1]} : vector<8x32xbf16> to vector<8x8xbf16>
    %cst_32 = arith.constant dense<0.000000e+00> : vector<8x8xf32>
    %51 = tpu.matmul %47, %50, %cst_32 {dimension_numbers = #tpu.dot_dimension_numbers<[1], [0], [0], [1], [0, 0, 1, 1], [], []>} : vector<8x8xbf16>, vector<8x8xbf16>, vector<8x8xf32> -> vector<8x8xf32>
    %52 = arith.truncf %49 : vector<8x8xf32> to vector<8x8xbf16>
    %c0_33 = arith.constant 0 : index
    %c0_34 = arith.constant 0 : index
    %53 = vector.load %arg13[%c0_33, %c0_34] : memref<16x32xbf16, #tpu.memory_space<vmem>>, vector<8x8xbf16>
    tpu.vector_store %arg13[%c0_33, %c0_34], %52 {strides = array<i32>} : memref<16x32xbf16, #tpu.memory_space<vmem>>, vector<8x8xbf16>,
    %54 = arith.truncf %51 : vector<8x8xf32> to vector<8x8xbf16>
    %c8 = arith.constant 8 : index
    %c0_35 = arith.constant 0 : index
    %55 = vector.load %arg13[%c8, %c0_35] : memref<16x32xbf16, #tpu.memory_space<vmem>>, vector<8x8xbf16>
    tpu.vector_store %arg13[%c8, %c0_35], %54 {strides = array<i32>} : memref<16x32xbf16, #tpu.memory_space<vmem>>, vector<8x8xbf16>,
    %56 = vector.extract_strided_slice %15 {offsets = [0, 8], sizes = [8, 8], strides = [1, 1]} : vector<8x32xbf16> to vector<8x8xbf16>
    %57 = vector.extract_strided_slice %20 {offsets = [0, 8], sizes = [8, 8], strides = [1, 1]} : vector<8x32xbf16> to vector<8x8xbf16>
    %58 = vector.extract_strided_slice %4 {offsets = [0, 8], sizes = [8, 8], strides = [1, 1]} : vector<8x32xbf16> to vector<8x8xbf16>
    %59 = vector.extract_strided_slice %6 {offsets = [0, 8], sizes = [8, 8], strides = [1, 1]} : vector<8x32xbf16> to vector<8x8xbf16>
    %cst_36 = arith.constant dense<0.000000e+00> : vector<8x8xf32>
    %60 = tpu.matmul %56, %58, %cst_36 {dimension_numbers = #tpu.dot_dimension_numbers<[1], [1], [0], [0], [0, 0, 1, 0], [], []>} : vector<8x8xbf16>, vector<8x8xbf16>, vector<8x8xf32> -> vector<8x8xf32>
    %cst_37 = arith.constant dense<0.000000e+00> : vector<8x8xf32>
    %61 = tpu.matmul %57, %59, %cst_37 {dimension_numbers = #tpu.dot_dimension_numbers<[1], [1], [0], [0], [0, 0, 1, 0], [], []>} : vector<8x8xbf16>, vector<8x8xbf16>, vector<8x8xf32> -> vector<8x8xf32>
    %cst_38 = arith.constant dense<0.000000e+00> : vector<8x8xf32>
    %62 = tpu.matmul %56, %59, %cst_38 {dimension_numbers = #tpu.dot_dimension_numbers<[1], [1], [0], [0], [0, 0, 1, 0], [], []>} : vector<8x8xbf16>, vector<8x8xbf16>, vector<8x8xf32> -> vector<8x8xf32>
    %cst_39 = arith.constant dense<0.000000e+00> : vector<8x8xf32>
    %63 = tpu.matmul %57, %58, %cst_39 {dimension_numbers = #tpu.dot_dimension_numbers<[1], [1], [0], [0], [0, 0, 1, 0], [], []>} : vector<8x8xbf16>, vector<8x8xbf16>, vector<8x8xf32> -> vector<8x8xf32>
    %64 = arith.subf %60, %61 : vector<8x8xf32>
    %65 = arith.addf %62, %63 : vector<8x8xf32>
    %66 = arith.mulf %64, %64 : vector<8x8xf32>
    %67 = arith.mulf %65, %65 : vector<8x8xf32>
    %68 = arith.addf %66, %67 : vector<8x8xf32>
    %69 = math.sqrt %68 : vector<8x8xf32>
    %cst_40 = arith.constant 2.500000e-01 : f32
    %70 = vector.broadcast %cst_40 : f32 to vector<8x8xf32>
    %71 = arith.mulf %69, %70 : vector<8x8xf32>
    %cst_41 = arith.constant dense<0xFF800000> : vector<8xf32>
    %72 = vector.multi_reduction <maximumf>, %71, %cst_41 [1] : vector<8x8xf32> to vector<8xf32>
    %73 = vector.shape_cast %72 : vector<8xf32> to vector<8x1xf32>
    %74 = vector.broadcast %73 : vector<8x1xf32> to vector<8x8xf32>
    %75 = arith.subf %71, %74 : vector<8x8xf32>
    %76 = math.exp %75 : vector<8x8xf32>
    %cst_42 = arith.constant dense<0.000000e+00> : vector<8xf32>
    %77 = vector.multi_reduction <add>, %76, %cst_42 [1] : vector<8x8xf32> to vector<8xf32>
    %78 = vector.shape_cast %77 : vector<8xf32> to vector<8x1xf32>
    %79 = tpu.reciprocal %78 {approx = true} : vector<8x1xf32> -> vector<8x1xf32>
    %80 = vector.broadcast %79 : vector<8x1xf32> to vector<8x8xf32>
    %81 = arith.mulf %76, %80 : vector<8x8xf32>
    %82 = arith.truncf %81 : vector<8x8xf32> to vector<8x8xbf16>
    %83 = vector.extract_strided_slice %8 {offsets = [0, 8], sizes = [8, 8], strides = [1, 1]} : vector<8x32xbf16> to vector<8x8xbf16>
    %cst_43 = arith.constant dense<0.000000e+00> : vector<8x8xf32>
    %84 = tpu.matmul %82, %83, %cst_43 {dimension_numbers = #tpu.dot_dimension_numbers<[1], [0], [0], [1], [0, 0, 1, 1], [], []>} : vector<8x8xbf16>, vector<8x8xbf16>, vector<8x8xf32> -> vector<8x8xf32>
    %85 = vector.extract_strided_slice %10 {offsets = [0, 8], sizes = [8, 8], strides = [1, 1]} : vector<8x32xbf16> to vector<8x8xbf16>
    %cst_44 = arith.constant dense<0.000000e+00> : vector<8x8xf32>
    %86 = tpu.matmul %82, %85, %cst_44 {dimension_numbers = #tpu.dot_dimension_numbers<[1], [0], [0], [1], [0, 0, 1, 1], [], []>} : vector<8x8xbf16>, vector<8x8xbf16>, vector<8x8xf32> -> vector<8x8xf32>
    %87 = arith.truncf %84 : vector<8x8xf32> to vector<8x8xbf16>
    %c0_45 = arith.constant 0 : index
    %c8_46 = arith.constant 8 : index
    %88 = vector.load %arg13[%c0_45, %c8_46] : memref<16x32xbf16, #tpu.memory_space<vmem>>, vector<8x8xbf16>
    tpu.vector_store %arg13[%c0_45, %c8_46], %87 {strides = array<i32>} : memref<16x32xbf16, #tpu.memory_space<vmem>>, vector<8x8xbf16>,
    %89 = arith.truncf %86 : vector<8x8xf32> to vector<8x8xbf16>
    %c8_47 = arith.constant 8 : index
    %c8_48 = arith.constant 8 : index
    %90 = vector.load %arg13[%c8_47, %c8_48] : memref<16x32xbf16, #tpu.memory_space<vmem>>, vector<8x8xbf16>
    tpu.vector_store %arg13[%c8_47, %c8_48], %89 {strides = array<i32>} : memref<16x32xbf16, #tpu.memory_space<vmem>>, vector<8x8xbf16>,
    %91 = vector.extract_strided_slice %15 {offsets = [0, 16], sizes = [8, 8], strides = [1, 1]} : vector<8x32xbf16> to vector<8x8xbf16>
    %92 = vector.extract_strided_slice %20 {offsets = [0, 16], sizes = [8, 8], strides = [1, 1]} : vector<8x32xbf16> to vector<8x8xbf16>
    %93 = vector.extract_strided_slice %4 {offsets = [0, 16], sizes = [8, 8], strides = [1, 1]} : vector<8x32xbf16> to vector<8x8xbf16>
    %94 = vector.extract_strided_slice %6 {offsets = [0, 16], sizes = [8, 8], strides = [1, 1]} : vector<8x32xbf16> to vector<8x8xbf16>
    %cst_49 = arith.constant dense<0.000000e+00> : vector<8x8xf32>
    %95 = tpu.matmul %91, %93, %cst_49 {dimension_numbers = #tpu.dot_dimension_numbers<[1], [1], [0], [0], [0, 0, 1, 0], [], []>} : vector<8x8xbf16>, vector<8x8xbf16>, vector<8x8xf32> -> vector<8x8xf32>
    %cst_50 = arith.constant dense<0.000000e+00> : vector<8x8xf32>
    %96 = tpu.matmul %92, %94, %cst_50 {dimension_numbers = #tpu.dot_dimension_numbers<[1], [1], [0], [0], [0, 0, 1, 0], [], []>} : vector<8x8xbf16>, vector<8x8xbf16>, vector<8x8xf32> -> vector<8x8xf32>
    %cst_51 = arith.constant dense<0.000000e+00> : vector<8x8xf32>
    %97 = tpu.matmul %91, %94, %cst_51 {dimension_numbers = #tpu.dot_dimension_numbers<[1], [1], [0], [0], [0, 0, 1, 0], [], []>} : vector<8x8xbf16>, vector<8x8xbf16>, vector<8x8xf32> -> vector<8x8xf32>
    %cst_52 = arith.constant dense<0.000000e+00> : vector<8x8xf32>
    %98 = tpu.matmul %92, %93, %cst_52 {dimension_numbers = #tpu.dot_dimension_numbers<[1], [1], [0], [0], [0, 0, 1, 0], [], []>} : vector<8x8xbf16>, vector<8x8xbf16>, vector<8x8xf32> -> vector<8x8xf32>
    %99 = arith.subf %95, %96 : vector<8x8xf32>
    %100 = arith.addf %97, %98 : vector<8x8xf32>
    %101 = arith.mulf %99, %99 : vector<8x8xf32>
    %102 = arith.mulf %100, %100 : vector<8x8xf32>
    %103 = arith.addf %101, %102 : vector<8x8xf32>
    %104 = math.sqrt %103 : vector<8x8xf32>
    %cst_53 = arith.constant 2.500000e-01 : f32
    %105 = vector.broadcast %cst_53 : f32 to vector<8x8xf32>
    %106 = arith.mulf %104, %105 : vector<8x8xf32>
    %cst_54 = arith.constant dense<0xFF800000> : vector<8xf32>
    %107 = vector.multi_reduction <maximumf>, %106, %cst_54 [1] : vector<8x8xf32> to vector<8xf32>
    %108 = vector.shape_cast %107 : vector<8xf32> to vector<8x1xf32>
    %109 = vector.broadcast %108 : vector<8x1xf32> to vector<8x8xf32>
    %110 = arith.subf %106, %109 : vector<8x8xf32>
    %111 = math.exp %110 : vector<8x8xf32>
    %cst_55 = arith.constant dense<0.000000e+00> : vector<8xf32>
    %112 = vector.multi_reduction <add>, %111, %cst_55 [1] : vector<8x8xf32> to vector<8xf32>
    %113 = vector.shape_cast %112 : vector<8xf32> to vector<8x1xf32>
    %114 = tpu.reciprocal %113 {approx = true} : vector<8x1xf32> -> vector<8x1xf32>
    %115 = vector.broadcast %114 : vector<8x1xf32> to vector<8x8xf32>
    %116 = arith.mulf %111, %115 : vector<8x8xf32>
    %117 = arith.truncf %116 : vector<8x8xf32> to vector<8x8xbf16>
    %118 = vector.extract_strided_slice %8 {offsets = [0, 16], sizes = [8, 8], strides = [1, 1]} : vector<8x32xbf16> to vector<8x8xbf16>
    %cst_56 = arith.constant dense<0.000000e+00> : vector<8x8xf32>
    %119 = tpu.matmul %117, %118, %cst_56 {dimension_numbers = #tpu.dot_dimension_numbers<[1], [0], [0], [1], [0, 0, 1, 1], [], []>} : vector<8x8xbf16>, vector<8x8xbf16>, vector<8x8xf32> -> vector<8x8xf32>
    %120 = vector.extract_strided_slice %10 {offsets = [0, 16], sizes = [8, 8], strides = [1, 1]} : vector<8x32xbf16> to vector<8x8xbf16>
    %cst_57 = arith.constant dense<0.000000e+00> : vector<8x8xf32>
    %121 = tpu.matmul %117, %120, %cst_57 {dimension_numbers = #tpu.dot_dimension_numbers<[1], [0], [0], [1], [0, 0, 1, 1], [], []>} : vector<8x8xbf16>, vector<8x8xbf16>, vector<8x8xf32> -> vector<8x8xf32>
    %122 = arith.truncf %119 : vector<8x8xf32> to vector<8x8xbf16>
    %c0_58 = arith.constant 0 : index
    %c16 = arith.constant 16 : index
    %123 = vector.load %arg13[%c0_58, %c16] : memref<16x32xbf16, #tpu.memory_space<vmem>>, vector<8x8xbf16>
    tpu.vector_store %arg13[%c0_58, %c16], %122 {strides = array<i32>} : memref<16x32xbf16, #tpu.memory_space<vmem>>, vector<8x8xbf16>,
    %124 = arith.truncf %121 : vector<8x8xf32> to vector<8x8xbf16>
    %c8_59 = arith.constant 8 : index
    %c16_60 = arith.constant 16 : index
    %125 = vector.load %arg13[%c8_59, %c16_60] : memref<16x32xbf16, #tpu.memory_space<vmem>>, vector<8x8xbf16>
    tpu.vector_store %arg13[%c8_59, %c16_60], %124 {strides = array<i32>} : memref<16x32xbf16, #tpu.memory_space<vmem>>, vector<8x8xbf16>,
    %126 = vector.extract_strided_slice %15 {offsets = [0, 24], sizes = [8, 8], strides = [1, 1]} : vector<8x32xbf16> to vector<8x8xbf16>
    %127 = vector.extract_strided_slice %20 {offsets = [0, 24], sizes = [8, 8], strides = [1, 1]} : vector<8x32xbf16> to vector<8x8xbf16>
    %128 = vector.extract_strided_slice %4 {offsets = [0, 24], sizes = [8, 8], strides = [1, 1]} : vector<8x32xbf16> to vector<8x8xbf16>
    %129 = vector.extract_strided_slice %6 {offsets = [0, 24], sizes = [8, 8], strides = [1, 1]} : vector<8x32xbf16> to vector<8x8xbf16>
    %cst_61 = arith.constant dense<0.000000e+00> : vector<8x8xf32>
    %130 = tpu.matmul %126, %128, %cst_61 {dimension_numbers = #tpu.dot_dimension_numbers<[1], [1], [0], [0], [0, 0, 1, 0], [], []>} : vector<8x8xbf16>, vector<8x8xbf16>, vector<8x8xf32> -> vector<8x8xf32>
    %cst_62 = arith.constant dense<0.000000e+00> : vector<8x8xf32>
    %131 = tpu.matmul %127, %129, %cst_62 {dimension_numbers = #tpu.dot_dimension_numbers<[1], [1], [0], [0], [0, 0, 1, 0], [], []>} : vector<8x8xbf16>, vector<8x8xbf16>, vector<8x8xf32> -> vector<8x8xf32>
    %cst_63 = arith.constant dense<0.000000e+00> : vector<8x8xf32>
    %132 = tpu.matmul %126, %129, %cst_63 {dimension_numbers = #tpu.dot_dimension_numbers<[1], [1], [0], [0], [0, 0, 1, 0], [], []>} : vector<8x8xbf16>, vector<8x8xbf16>, vector<8x8xf32> -> vector<8x8xf32>
    %cst_64 = arith.constant dense<0.000000e+00> : vector<8x8xf32>
    %133 = tpu.matmul %127, %128, %cst_64 {dimension_numbers = #tpu.dot_dimension_numbers<[1], [1], [0], [0], [0, 0, 1, 0], [], []>} : vector<8x8xbf16>, vector<8x8xbf16>, vector<8x8xf32> -> vector<8x8xf32>
    %134 = arith.subf %130, %131 : vector<8x8xf32>
    %135 = arith.addf %132, %133 : vector<8x8xf32>
    %136 = arith.mulf %134, %134 : vector<8x8xf32>
    %137 = arith.mulf %135, %135 : vector<8x8xf32>
    %138 = arith.addf %136, %137 : vector<8x8xf32>
    %139 = math.sqrt %138 : vector<8x8xf32>
    %cst_65 = arith.constant 2.500000e-01 : f32
    %140 = vector.broadcast %cst_65 : f32 to vector<8x8xf32>
    %141 = arith.mulf %139, %140 : vector<8x8xf32>
    %cst_66 = arith.constant dense<0xFF800000> : vector<8xf32>
    %142 = vector.multi_reduction <maximumf>, %141, %cst_66 [1] : vector<8x8xf32> to vector<8xf32>
    %143 = vector.shape_cast %142 : vector<8xf32> to vector<8x1xf32>
    %144 = vector.broadcast %143 : vector<8x1xf32> to vector<8x8xf32>
    %145 = arith.subf %141, %144 : vector<8x8xf32>
    %146 = math.exp %145 : vector<8x8xf32>
    %cst_67 = arith.constant dense<0.000000e+00> : vector<8xf32>
    %147 = vector.multi_reduction <add>, %146, %cst_67 [1] : vector<8x8xf32> to vector<8xf32>
    %148 = vector.shape_cast %147 : vector<8xf32> to vector<8x1xf32>
    %149 = tpu.reciprocal %148 {approx = true} : vector<8x1xf32> -> vector<8x1xf32>
    %150 = vector.broadcast %149 : vector<8x1xf32> to vector<8x8xf32>
    %151 = arith.mulf %146, %150 : vector<8x8xf32>
    %152 = arith.truncf %151 : vector<8x8xf32> to vector<8x8xbf16>
    %153 = vector.extract_strided_slice %8 {offsets = [0, 24], sizes = [8, 8], strides = [1, 1]} : vector<8x32xbf16> to vector<8x8xbf16>
    %cst_68 = arith.constant dense<0.000000e+00> : vector<8x8xf32>
    %154 = tpu.matmul %152, %153, %cst_68 {dimension_numbers = #tpu.dot_dimension_numbers<[1], [0], [0], [1], [0, 0, 1, 1], [], []>} : vector<8x8xbf16>, vector<8x8xbf16>, vector<8x8xf32> -> vector<8x8xf32>
    %155 = vector.extract_strided_slice %10 {offsets = [0, 24], sizes = [8, 8], strides = [1, 1]} : vector<8x32xbf16> to vector<8x8xbf16>
    %cst_69 = arith.constant dense<0.000000e+00> : vector<8x8xf32>
    %156 = tpu.matmul %152, %155, %cst_69 {dimension_numbers = #tpu.dot_dimension_numbers<[1], [0], [0], [1], [0, 0, 1, 1], [], []>} : vector<8x8xbf16>, vector<8x8xbf16>, vector<8x8xf32> -> vector<8x8xf32>
    %157 = arith.truncf %154 : vector<8x8xf32> to vector<8x8xbf16>
    %c0_70 = arith.constant 0 : index
    %c24 = arith.constant 24 : index
    %158 = vector.load %arg13[%c0_70, %c24] : memref<16x32xbf16, #tpu.memory_space<vmem>>, vector<8x8xbf16>
    tpu.vector_store %arg13[%c0_70, %c24], %157 {strides = array<i32>} : memref<16x32xbf16, #tpu.memory_space<vmem>>, vector<8x8xbf16>,
    %159 = arith.truncf %156 : vector<8x8xf32> to vector<8x8xbf16>
    %c8_71 = arith.constant 8 : index
    %c24_72 = arith.constant 24 : index
    %160 = vector.load %arg13[%c8_71, %c24_72] : memref<16x32xbf16, #tpu.memory_space<vmem>>, vector<8x8xbf16>
    tpu.vector_store %arg13[%c8_71, %c24_72], %159 {strides = array<i32>} : memref<16x32xbf16, #tpu.memory_space<vmem>>, vector<8x8xbf16>,
    %c0_73 = arith.constant 0 : index
    %c0_74 = arith.constant 0 : index
    %161 = vector.load %arg13[%c0_73, %c0_74] : memref<16x32xbf16, #tpu.memory_space<vmem>>, vector<16x32xbf16>
    %c0_75 = arith.constant 0 : index
    %c0_76 = arith.constant 0 : index
    %162 = vector.load %arg8[%c0_75, %c0_76] : memref<32x32xbf16, #tpu.memory_space<vmem>>, vector<32x32xbf16>
    %cst_77 = arith.constant dense<0.000000e+00> : vector<16x32xf32>
    %163 = tpu.matmul %161, %162, %cst_77 {dimension_numbers = #tpu.dot_dimension_numbers<[1], [0], [0], [1], [0, 0, 1, 1], [], []>} : vector<16x32xbf16>, vector<32x32xbf16>, vector<16x32xf32> -> vector<16x32xf32>
    %164 = vector.extract_strided_slice %163 {offsets = [0, 0], sizes = [8, 32], strides = [1, 1]} : vector<16x32xf32> to vector<8x32xf32>
    %c0_78 = arith.constant 0 : index
    %c0_79 = arith.constant 0 : index
    %c0_80 = arith.constant 0 : index
    %165 = vector.load %arg9[%c0_78, %c0_79, %c0_80] : memref<1x8x32xf32, #tpu.memory_space<vmem>>, vector<1x8x32xf32>
    %166 = vector.shape_cast %165 : vector<1x8x32xf32> to vector<8x32xf32>
    %167 = vector.shape_cast %164 : vector<8x32xf32> to vector<1x8x32xf32>
    tpu.vector_store %arg9[%c0_78, %c0_79, %c0_80], %167 {strides = array<i32>} : memref<1x8x32xf32, #tpu.memory_space<vmem>>, vector<1x8x32xf32>,
    %168 = vector.extract_strided_slice %163 {offsets = [8, 0], sizes = [8, 32], strides = [1, 1]} : vector<16x32xf32> to vector<8x32xf32>
    %c0_81 = arith.constant 0 : index
    %c0_82 = arith.constant 0 : index
    %c0_83 = arith.constant 0 : index
    %169 = vector.load %arg10[%c0_81, %c0_82, %c0_83] : memref<1x8x32xf32, #tpu.memory_space<vmem>>, vector<1x8x32xf32>
    %170 = vector.shape_cast %169 : vector<1x8x32xf32> to vector<8x32xf32>
    %171 = vector.shape_cast %168 : vector<8x32xf32> to vector<1x8x32xf32>
    tpu.vector_store %arg10[%c0_81, %c0_82, %c0_83], %171 {strides = array<i32>} : memref<1x8x32xf32, #tpu.memory_space<vmem>>, vector<1x8x32xf32>,
    return
  }
  func.func @transform_0(%arg0: i32, %arg1: i32) -> (i32, i32, i32, i32) {
    %c0_i32 = arith.constant 0 : i32
    %c0_i32_0 = arith.constant 0 : i32
    %c0_i32_1 = arith.constant 0 : i32
    return %arg0, %c0_i32, %arg1, %c0_i32_0 : i32, i32, i32, i32
  }
  func.func @transform_1(%arg0: i32, %arg1: i32) -> (i32, i32, i32, i32) {
    %c0_i32 = arith.constant 0 : i32
    %c0_i32_0 = arith.constant 0 : i32
    %c0_i32_1 = arith.constant 0 : i32
    %c0_i32_2 = arith.constant 0 : i32
    return %arg0, %c0_i32, %c0_i32_0, %c0_i32_1 : i32, i32, i32, i32
  }
  func.func @transform_2(%arg0: i32, %arg1: i32) -> (i32, i32, i32, i32) {
    %c0_i32 = arith.constant 0 : i32
    %c0_i32_0 = arith.constant 0 : i32
    %c0_i32_1 = arith.constant 0 : i32
    %c0_i32_2 = arith.constant 0 : i32
    return %arg0, %c0_i32, %c0_i32_0, %c0_i32_1 : i32, i32, i32, i32
  }
  func.func @transform_3(%arg0: i32, %arg1: i32) -> (i32, i32) {
    %c0_i32 = arith.constant 0 : i32
    %c0_i32_0 = arith.constant 0 : i32
    %c0_i32_1 = arith.constant 0 : i32
    return %c0_i32, %c0_i32_0 : i32, i32
  }
  func.func @transform_4(%arg0: i32, %arg1: i32) -> (i32, i32) {
    %c0_i32 = arith.constant 0 : i32
    %c0_i32_0 = arith.constant 0 : i32
    %c0_i32_1 = arith.constant 0 : i32
    return %c0_i32, %c0_i32_0 : i32, i32
  }
  func.func @transform_5(%arg0: i32, %arg1: i32) -> (i32, i32) {
    %c0_i32 = arith.constant 0 : i32
    %c0_i32_0 = arith.constant 0 : i32
    %c0_i32_1 = arith.constant 0 : i32
    return %c0_i32, %c0_i32_0 : i32, i32
  }
  func.func @transform_6(%arg0: i32, %arg1: i32) -> (i32, i32) {
    %c0_i32 = arith.constant 0 : i32
    %c0_i32_0 = arith.constant 0 : i32
    %c0_i32_1 = arith.constant 0 : i32
    return %c0_i32, %c0_i32_0 : i32, i32
  }
  func.func @transform_7(%arg0: i32, %arg1: i32) -> (i32, i32, i32) {
    %c0_i32 = arith.constant 0 : i32
    %c0_i32_0 = arith.constant 0 : i32
    return %arg0, %arg1, %c0_i32 : i32, i32, i32
  }
  func.func @transform_8(%arg0: i32, %arg1: i32) -> (i32, i32, i32) {
    %c0_i32 = arith.constant 0 : i32
    %c0_i32_0 = arith.constant 0 : i32
    return %arg0, %arg1, %c0_i32 : i32, i32, i32
  }
}

</mosaic_0001>

<llo_original>
// kernel: tpu_custom_call.1
$region0: #{tpu_custom_call.1}
  #allocation0 [shape = 'u32[]', space=smem, size = 0x4, offset = 0x4, fixed_abs, tag = 'smem constant byte address 0x4 - core index']
  #allocation1 [shape = 'u32[72,128]{1,0:T(1,128)}', space=vmem, size = 0x9000, scoped, tag = 'internal scratch']
  #allocation2 [shape = 'bf16[2,8,32]{2,1,0:T(8,128)(2,1)}', space=vmem, size = 0x1000, scoped, tag = 'scratch operand']
  #allocation3 [shape = 'bf16[2,8,32]{2,1,0:T(8,128)(2,1)}', space=vmem, size = 0x1000, scoped, tag = 'scratch operand']
  #allocation4 [shape = 'bf16[16,32]{1,0:T(8,128)(2,1)}', space=vmem, size = 0x1000, scoped, tag = 'scratch operand']
  %s0 = inlined_call_operand.hbm [shape: bf16[2,2,8,32], index: 0, kind: input, shape index: {}]
  %s1 = inlined_call_operand.hbm [shape: bf16[2,2,8,32], index: 1, kind: input, shape index: {}]
  %s2 = inlined_call_operand.hbm [shape: bf16[2,2,8,32], index: 2, kind: input, shape index: {}]
  %s3 = inlined_call_operand.hbm [shape: bf16[32,32], index: 3, kind: input, shape index: {}]
  %s4 = inlined_call_operand.hbm [shape: bf16[32,32], index: 4, kind: input, shape index: {}]
  %s5 = inlined_call_operand.hbm [shape: bf16[32,32], index: 5, kind: input, shape index: {}]
  %s6 = inlined_call_operand.hbm [shape: bf16[32,32], index: 6, kind: input, shape index: {}]
  %s7 = inlined_call_operand.hbm [shape: f32[2,8,32], index: 7, kind: output, shape index: {0}]
  %s8 = inlined_call_operand.hbm [shape: f32[2,8,32], index: 8, kind: output, shape index: {1}]
  %9 = xla_tuple %s7, %s8
  %s10 = sld [smem:[#allocation0]]
  $region101: #{tpu_custom_call.1} parent=0
    _
  %s12 = ssub.s32 1, %s10
  %s13 = scalar_select 0, %s12, %s10
  $region1: #{tpu_custom_call.1} parent=0
    #allocation5 [shape = 'u8[8192]{0}', space=vmem, size = 0x2000, scoped, tag = 'input window, operand 0']
    #allocation6 [shape = 's32[2]{0}', space=sflag, size = 0x8, scoped, tag = 'scoped memory for tpu_custom_call.1']
    #allocation7 [shape = 's32[2]{0}', space=sflag, size = 0x8, scoped, tag = 'scoped memory for tpu_custom_call.1']
    #allocation8 [shape = 'u8[8192]{0}', space=vmem, size = 0x2000, scoped, tag = 'input window, operand 1']
    #allocation9 [shape = 's32[2]{0}', space=sflag, size = 0x8, scoped, tag = 'scoped memory for tpu_custom_call.1']
    #allocation10 [shape = 'u8[8192]{0}', space=vmem, size = 0x2000, scoped, tag = 'input window, operand 2']
    #allocation11 [shape = 'u8[8192]{0}', space=vmem, size = 0x2000, scoped, tag = 'input window, operand 3, single buffered']
    #allocation12 [shape = 's32[1]{0}', space=sflag, size = 0x4, scoped, tag = 'scoped memory for tpu_custom_call.1']
    #allocation13 [shape = 'u8[8192]{0}', space=vmem, size = 0x2000, scoped, tag = 'input window, operand 4, single buffered']
    #allocation14 [shape = 'u8[8192]{0}', space=vmem, size = 0x2000, scoped, tag = 'input window, operand 5, single buffered']
    #allocation15 [shape = 's32[1]{0}', space=sflag, size = 0x4, scoped, tag = 'scoped memory for tpu_custom_call.1']
    #allocation16 [shape = 'u8[8192]{0}', space=vmem, size = 0x2000, scoped, tag = 'input window, operand 6, single buffered']
    #allocation17 [shape = 'u8[8192]{0}', space=vmem, size = 0x2000, scoped, tag = 'output window, operand 0']
    #allocation18 [shape = 'u8[8192]{0}', space=vmem, size = 0x2000, scoped, tag = 'output window, operand 1']
    #allocation19 [shape = 's32[2]{0}', space=sflag, size = 0x8, scoped, tag = 'scoped memory for tpu_custom_call.1']
    %14 = vsyncpa [#allocation6], 0
    %s15 = scalar_lea.sflag [#allocation6], 1
    %16 = vsyncpa %s15, 0
    %17 = vsyncpa [#allocation9], 0
    %s18 = scalar_lea.sflag [#allocation9], 1
    %19 = vsyncpa %s18, 0
    %20 = vsyncpa [#allocation12], 0
    %21 = vsyncpa [#allocation15], 0
    %22 = vsyncpa [#allocation7], 0
    %s23 = scalar_lea.sflag [#allocation7], 1
    %24 = vsyncpa %s23, 0
    %25 = vsyncpa [#allocation19], 0
    %s26 = scalar_lea.sflag [#allocation19], 1
    %27 = vsyncpa %s26, 0
    loop: start=0, step=1, limit=4
    $region2: #{tpu_custom_call.1} parent=1 // loop_pre_header
      _
    $region3: #{tpu_custom_call.1} parent=1 // loop_header
      %s29 = sphi 0, %s33
      %p30 = scmp.ge.s32.totalorder %s29, 4
      %s36 = sphi 0, %s48
      %s37 = sphi 0, %s44
      %s38 = sphi 0, %s36
      %s39 = sphi 0, %s37
      %s40 = sphi 0, %s38
      %s41 = sphi 0, %s39
      %s53 = sphi 0, %s55
      %s56 = sphi 0, %s53
      %s57 = sphi 0, %s56
      %s73 = sphi 0, %s57
      %s79 = sphi 0, %s81
      %s82 = sphi 0, %s79
      %s83 = sphi 0, %s82
      %s99 = sphi 0, %s83
      %s105 = sphi 0, %s107
      %s108 = sphi 0, %s105
      %s109 = sphi 0, %s108
      %s125 = sphi 0, %s109
      %s129 = sphi 0, %s129
      %s131 = sphi 0, %s129
      %s132 = sphi 0, %s131
      %s146 = sphi 0, %s132
      %s150 = sphi 0, %s150
      %s152 = sphi 0, %s150
      %s153 = sphi 0, %s152
      %s167 = sphi 0, %s153
      %s171 = sphi 0, %s171
      %s173 = sphi 0, %s171
      %s174 = sphi 0, %s173
      %s188 = sphi 0, %s174
      %s192 = sphi 0, %s192
      %s194 = sphi 0, %s192
      %s195 = sphi 0, %s194
      %s209 = sphi 0, %s195
      %s217 = sphi 0, %s219
      %s220 = sphi 0, %s217
      %s221 = sphi 0, %s220
      %s237 = sphi 0, %s221
      %s245 = sphi 0, %s247
      %s248 = sphi 0, %s245
      %s249 = sphi 0, %s248
      %s265 = sphi 0, %s249
    $region4: #{tpu_custom_call.1} parent=1 // loop_header_branch
      %32 = sbr.rel (%p30) target = $region8
    $region5: #{tpu_custom_call.1} parent=1 // loop_body
      %s34 = ssub.s32 %s29, 1
      %s35 = ssub.s32 %s29, 2
      %s42 = sadd.s32 1, %s37
      %p43 = scmp.ge.s32.totalorder %s42, 1
      %s44 = scalar_select %p43, 0, %s42
      %s45 = sadd.s32 1, %s36
      %s46 = scalar_select %p43, %s45, %s36
      %p47 = scmp.ge.s32.totalorder %s46, 2
      %s48 = scalar_select %p47, 0, %s46
      %s49 = ssub.s32 %s36, %s48
      %s50 = ssub.s32 %s37, %s44
      %s51 = sor.u32 %s49, %s50
      %p52 = scmp.eq.s32.totalorder %s51, 0
      %s54 = sadd.s32 %s53, 1
      %s55 = scalar_select %p52, %s53, %s54
      %p58 = pneg %p52
      %p59 = scmp.eq.s32.totalorder %s29, 1
      %p60 = por %p58, %p59
      %p61 = scmp.ne.s32.totalorder %s53, %s56
      %p62 = scmp.eq.s32.totalorder %s29, 0
      %p63 = por %p61, %p62
      %p64 = scmp.ne.s32.totalorder %s53, %s56
      %p65 = scmp.eq.s32.totalorder %s34, 1
      %p66 = por %p64, %p65
      %p67 = scmp.ne.s32.totalorder %s56, %s57
      %p68 = scmp.eq.s32.totalorder %s34, 0
      %p69 = por %p67, %p68
      %p70 = scmp.ne.s32.totalorder %s56, %s57
      %p71 = scmp.eq.s32.totalorder %s35, 1
      %p72 = por %p70, %p71
      %p74 = scmp.ne.s32.totalorder %s57, %s73
      %p75 = scmp.eq.s32.totalorder %s35, 0
      %p76 = por %p74, %p75
      %s77 = ssub.s32 %s36, %s48
      %p78 = scmp.eq.s32.totalorder %s77, 0
      %s80 = sadd.s32 %s79, 1
      %s81 = scalar_select %p78, %s79, %s80
      %p84 = pneg %p78
      %p85 = scmp.eq.s32.totalorder %s29, 1
      %p86 = por %p84, %p85
      %p87 = scmp.ne.s32.totalorder %s79, %s82
      %p88 = scmp.eq.s32.totalorder %s29, 0
      %p89 = por %p87, %p88
      %p90 = scmp.ne.s32.totalorder %s79, %s82
      %p91 = scmp.eq.s32.totalorder %s34, 1
      %p92 = por %p90, %p91
      %p93 = scmp.ne.s32.totalorder %s82, %s83
      %p94 = scmp.eq.s32.totalorder %s34, 0
      %p95 = por %p93, %p94
      %p96 = scmp.ne.s32.totalorder %s82, %s83
      %p97 = scmp.eq.s32.totalorder %s35, 1
      %p98 = por %p96, %p97
      %p100 = scmp.ne.s32.totalorder %s83, %s99
      %p101 = scmp.eq.s32.totalorder %s35, 0
      %p102 = por %p100, %p101
      %s103 = ssub.s32 %s36, %s48
      %p104 = scmp.eq.s32.totalorder %s103, 0
      %s106 = sadd.s32 %s105, 1
      %s107 = scalar_select %p104, %s105, %s106
      %p110 = pneg %p104
      %p111 = scmp.eq.s32.totalorder %s29, 1
      %p112 = por %p110, %p111
      %p113 = scmp.ne.s32.totalorder %s105, %s108
      %p114 = scmp.eq.s32.totalorder %s29, 0
      %p115 = por %p113, %p114
      %p116 = scmp.ne.s32.totalorder %s105, %s108
      %p117 = scmp.eq.s32.totalorder %s34, 1
      %p118 = por %p116, %p117
      %p119 = scmp.ne.s32.totalorder %s108, %s109
      %p120 = scmp.eq.s32.totalorder %s34, 0
      %p121 = por %p119, %p120
      %p122 = scmp.ne.s32.totalorder %s108, %s109
      %p123 = scmp.eq.s32.totalorder %s35, 1
      %p124 = por %p122, %p123
      %p126 = scmp.ne.s32.totalorder %s109, %s125
      %p127 = scmp.eq.s32.totalorder %s35, 0
      %p128 = por %p126, %p127
      %s130 = sadd.s32 %s129, 1
      %p133 = scmp.eq.s32.totalorder %s29, 1
      %p134 = scmp.ne.s32.totalorder %s129, %s131
      %p135 = scmp.eq.s32.totalorder %s29, 0
      %p136 = por %p134, %p135
      %p137 = scmp.ne.s32.totalorder %s129, %s131
      %p138 = scmp.eq.s32.totalorder %s34, 1
      %p139 = por %p137, %p138
      %p140 = scmp.ne.s32.totalorder %s131, %s132
      %p141 = scmp.eq.s32.totalorder %s34, 0
      %p142 = por %p140, %p141
      %p143 = scmp.ne.s32.totalorder %s131, %s132
      %p144 = scmp.eq.s32.totalorder %s35, 1
      %p145 = por %p143, %p144
      %p147 = scmp.ne.s32.totalorder %s132, %s146
      %p148 = scmp.eq.s32.totalorder %s35, 0
      %p149 = por %p147, %p148
      %s151 = sadd.s32 %s150, 1
      %p154 = scmp.eq.s32.totalorder %s29, 1
      %p155 = scmp.ne.s32.totalorder %s150, %s152
      %p156 = scmp.eq.s32.totalorder %s29, 0
      %p157 = por %p155, %p156
      %p158 = scmp.ne.s32.totalorder %s150, %s152
      %p159 = scmp.eq.s32.totalorder %s34, 1
      %p160 = por %p158, %p159
      %p161 = scmp.ne.s32.totalorder %s152, %s153
      %p162 = scmp.eq.s32.totalorder %s34, 0
      %p163 = por %p161, %p162
      %p164 = scmp.ne.s32.totalorder %s152, %s153
      %p165 = scmp.eq.s32.totalorder %s35, 1
      %p166 = por %p164, %p165
      %p168 = scmp.ne.s32.totalorder %s153, %s167
      %p169 = scmp.eq.s32.totalorder %s35, 0
      %p170 = por %p168, %p169
      %s172 = sadd.s32 %s171, 1
      %p175 = scmp.eq.s32.totalorder %s29, 1
      %p176 = scmp.ne.s32.totalorder %s171, %s173
      %p177 = scmp.eq.s32.totalorder %s29, 0
      %p178 = por %p176, %p177
      %p179 = scmp.ne.s32.totalorder %s171, %s173
      %p180 = scmp.eq.s32.totalorder %s34, 1
      %p181 = por %p179, %p180
      %p182 = scmp.ne.s32.totalorder %s173, %s174
      %p183 = scmp.eq.s32.totalorder %s34, 0
      %p184 = por %p182, %p183
      %p185 = scmp.ne.s32.totalorder %s173, %s174
      %p186 = scmp.eq.s32.totalorder %s35, 1
      %p187 = por %p185, %p186
      %p189 = scmp.ne.s32.totalorder %s174, %s188
      %p190 = scmp.eq.s32.totalorder %s35, 0
      %p191 = por %p189, %p190
      %s193 = sadd.s32 %s192, 1
      %p196 = scmp.eq.s32.totalorder %s29, 1
      %p197 = scmp.ne.s32.totalorder %s192, %s194
      %p198 = scmp.eq.s32.totalorder %s29, 0
      %p199 = por %p197, %p198
      %p200 = scmp.ne.s32.totalorder %s192, %s194
      %p201 = scmp.eq.s32.totalorder %s34, 1
      %p202 = por %p200, %p201
      %p203 = scmp.ne.s32.totalorder %s194, %s195
      %p204 = scmp.eq.s32.totalorder %s34, 0
      %p205 = por %p203, %p204
      %p206 = scmp.ne.s32.totalorder %s194, %s195
      %p207 = scmp.eq.s32.totalorder %s35, 1
      %p208 = por %p206, %p207
      %p210 = scmp.ne.s32.totalorder %s195, %s209
      %p211 = scmp.eq.s32.totalorder %s35, 0
      %p212 = por %p210, %p211
      %s213 = ssub.s32 %s36, %s48
      %s214 = ssub.s32 %s37, %s44
      %s215 = sor.u32 %s213, %s214
      %p216 = scmp.eq.s32.totalorder %s215, 0
      %s218 = sadd.s32 %s217, 1
      %s219 = scalar_select %p216, %s217, %s218
      %p222 = pneg %p216
      %p223 = scmp.eq.s32.totalorder %s29, 1
      %p224 = por %p222, %p223
      %p225 = scmp.ne.s32.totalorder %s217, %s220
      %p226 = scmp.eq.s32.totalorder %s29, 0
      %p227 = por %p225, %p226
      %p228 = scmp.ne.s32.totalorder %s217, %s220
      %p229 = scmp.eq.s32.totalorder %s34, 1
      %p230 = por %p228, %p229
      %p231 = scmp.ne.s32.totalorder %s220, %s221
      %p232 = scmp.eq.s32.totalorder %s34, 0
      %p233 = por %p231, %p232
      %p234 = scmp.ne.s32.totalorder %s220, %s221
      %p235 = scmp.eq.s32.totalorder %s35, 1
      %p236 = por %p234, %p235
      %p238 = scmp.ne.s32.totalorder %s221, %s237
      %p239 = scmp.eq.s32.totalorder %s35, 0
      %p240 = por %p238, %p239
      %s241 = ssub.s32 %s36, %s48
      %s242 = ssub.s32 %s37, %s44
      %s243 = sor.u32 %s241, %s242
      %p244 = scmp.eq.s32.totalorder %s243, 0
      %s246 = sadd.s32 %s245, 1
      %s247 = scalar_select %p244, %s245, %s246
      %p250 = pneg %p244
      %p251 = scmp.eq.s32.totalorder %s29, 1
      %p252 = por %p250, %p251
      %p253 = scmp.ne.s32.totalorder %s245, %s248
      %p254 = scmp.eq.s32.totalorder %s29, 0
      %p255 = por %p253, %p254
      %p256 = scmp.ne.s32.totalorder %s245, %s248
      %p257 = scmp.eq.s32.totalorder %s34, 1
      %p258 = por %p256, %p257
      %p259 = scmp.ne.s32.totalorder %s248, %s249
      %p260 = scmp.eq.s32.totalorder %s34, 0
      %p261 = por %p259, %p260
      %p262 = scmp.ne.s32.totalorder %s248, %s249
      %p263 = scmp.eq.s32.totalorder %s35, 1
      %p264 = por %p262, %p263
      %p266 = scmp.ne.s32.totalorder %s249, %s265
      %p267 = scmp.eq.s32.totalorder %s35, 0
      %p268 = por %p266, %p267
      %p269 = scmp.le.s32.totalorder 1, %s29
      %p270 = scmp.lt.s32.totalorder %s29, 3
      %p271 = pnand %p269, %p270
      %p272 = pneg %p271
      // Predicated region
      $region9: #{tpu_custom_call.1} parent=5 // pred_check
        _
      $region10: #{tpu_custom_call.1} parent=5 // pred_check_branch
        %274 = sbr.rel (%p271) target = $region12
      $region11: #{tpu_custom_call.1} parent=5 // pred_region
        %s275 = ssub.s32 %s29, 1
        // Predicated region
        $region13: #{tpu_custom_call.1} parent=11 // pred_check
          %p276 = pneg %p142
        $region14: #{tpu_custom_call.1} parent=11 // pred_check_branch
          %278 = sbr.rel (%p276) target = $region16
        $region15: #{tpu_custom_call.1} parent=11 // pred_region
          %280 = vsyncadd [#allocation12], 0
          %s281 = sshll.u32 %s3, 4
          %s282 = int_to_ptr.hbm [resolvable:$true] %s281
          %s283 = sshll.u32 [#allocation11], 4
          %s284 = int_to_ptr.vmem [resolvable:$true] %s283
          %289 = dma.hbm_to_vmem [thread:$0]  %s282, 256, %s284, [#allocation12], 64, 64, 4
        $region16: #{tpu_custom_call.1} parent=11 // pred_fallthru
          _
        // Predicated region
        $region17: #{tpu_custom_call.1} parent=11 // pred_check
          %p290 = pneg %p163
        $region18: #{tpu_custom_call.1} parent=11 // pred_check_branch
          %292 = sbr.rel (%p290) target = $region20
        $region19: #{tpu_custom_call.1} parent=11 // pred_region
          %294 = vsyncadd [#allocation12], 0
          %s295 = sshll.u32 %s4, 4
          %s296 = int_to_ptr.hbm [resolvable:$true] %s295
          %s297 = sshll.u32 [#allocation13], 4
          %s298 = int_to_ptr.vmem [resolvable:$true] %s297
          %303 = dma.hbm_to_vmem [thread:$0]  %s296, 256, %s298, [#allocation12], 64, 64, 4
        $region20: #{tpu_custom_call.1} parent=11 // pred_fallthru
          _
        // Predicated region
        $region21: #{tpu_custom_call.1} parent=11 // pred_check
          %p304 = pneg %p184
        $region22: #{tpu_custom_call.1} parent=11 // pred_check_branch
          %306 = sbr.rel (%p304) target = $region24
        $region23: #{tpu_custom_call.1} parent=11 // pred_region
          %308 = vsyncadd [#allocation15], 0
          %s309 = sshll.u32 %s5, 4
          %s310 = int_to_ptr.hbm [resolvable:$true] %s309
          %s311 = sshll.u32 [#allocation14], 4
          %s312 = int_to_ptr.vmem [resolvable:$true] %s311
          %317 = dma.hbm_to_vmem [thread:$0]  %s310, 256, %s312, [#allocation15], 64, 64, 4
        $region24: #{tpu_custom_call.1} parent=11 // pred_fallthru
          _
        // Predicated region
        $region25: #{tpu_custom_call.1} parent=11 // pred_check
          %p318 = pneg %p205
        $region26: #{tpu_custom_call.1} parent=11 // pred_check_branch
          %320 = sbr.rel (%p318) target = $region28
        $region27: #{tpu_custom_call.1} parent=11 // pred_region
          %322 = vsyncadd [#allocation15], 0
          %s323 = sshll.u32 %s6, 4
          %s324 = int_to_ptr.hbm [resolvable:$true] %s323
          %s325 = sshll.u32 [#allocation16], 4
          %s326 = int_to_ptr.vmem [resolvable:$true] %s325
          %331 = dma.hbm_to_vmem [thread:$0]  %s324, 256, %s326, [#allocation15], 64, 64, 4
        $region28: #{tpu_custom_call.1} parent=11 // pred_fallthru
          _
      $region12: #{tpu_custom_call.1} parent=5 // pred_fallthru
        _
      %p332 = scmp.lt.s32.totalorder %s29, 2
      // Predicated region
      $region29: #{tpu_custom_call.1} parent=5 // pred_check
        %p333 = pneg %p332
      $region30: #{tpu_custom_call.1} parent=5 // pred_check_branch
        %335 = sbr.rel (%p333) target = $region32
      $region31: #{tpu_custom_call.1} parent=5 // pred_region
        // Predicated region
        $region33: #{tpu_custom_call.1} parent=31 // pred_check
          %p336 = pneg %p63
        $region34: #{tpu_custom_call.1} parent=31 // pred_check_branch
          %338 = sbr.rel (%p336) target = $region36
        $region35: #{tpu_custom_call.1} parent=31 // pred_region
          %s339 = sand.u32 %s53, 1
          %s340 = scalar_lea.sflag [#allocation6], %s339
          %s341 = sand.u32 %s53, 1
          %s342 = smul.addr %s341, 8
          %s343 = scalar_lea.vmem [#allocation5], %s342
          %345 = vsyncadd %s340, 0
          %s346 = smul.addr %s36, 2
          %s347 = sadd.s32 %s37, %s346
          %s348 = smul.addr %s347, 4
          %s349 = scalar_lea.hbm %s0, %s348
          %s350 = sshll.u32 %s349, 4
          %s351 = int_to_ptr.hbm [resolvable:$true] %s350
          %s352 = sshll.u32 %s343, 4
          %s353 = int_to_ptr.vmem [resolvable:$true] %s352
          %358 = dma.hbm_to_vmem [thread:$0]  %s351, 128, %s353, %s340, 64, 64, 4
        $region36: #{tpu_custom_call.1} parent=31 // pred_fallthru
          _
        // Predicated region
        $region37: #{tpu_custom_call.1} parent=31 // pred_check
          %p359 = pneg %p89
        $region38: #{tpu_custom_call.1} parent=31 // pred_check_branch
          %361 = sbr.rel (%p359) target = $region40
        $region39: #{tpu_custom_call.1} parent=31 // pred_region
          %s362 = sand.u32 %s29, 1
          %s363 = scalar_lea.sflag [#allocation9], %s362
          %s364 = sand.u32 %s79, 1
          %s365 = smul.addr %s364, 8
          %s366 = scalar_lea.vmem [#allocation8], %s365
          %368 = vsyncadd %s363, 0
          %s369 = smul.addr %s36, 2
          %s370 = smul.addr %s369, 4
          %s371 = scalar_lea.hbm %s1, %s370
          %s372 = sshll.u32 %s371, 4
          %s373 = int_to_ptr.hbm [resolvable:$true] %s372
          %s374 = sshll.u32 %s366, 4
          %s375 = int_to_ptr.vmem [resolvable:$true] %s374
          %380 = dma.hbm_to_vmem [thread:$0]  %s373, 128, %s375, %s363, 64, 64, 4
        $region40: #{tpu_custom_call.1} parent=31 // pred_fallthru
          _
        // Predicated region
        $region41: #{tpu_custom_call.1} parent=31 // pred_check
          %p381 = pneg %p115
        $region42: #{tpu_custom_call.1} parent=31 // pred_check_branch
          %383 = sbr.rel (%p381) target = $region44
        $region43: #{tpu_custom_call.1} parent=31 // pred_region
          %s384 = sand.u32 %s29, 1
          %s385 = scalar_lea.sflag [#allocation9], %s384
          %s386 = sand.u32 %s105, 1
          %s387 = smul.addr %s386, 8
          %s388 = scalar_lea.vmem [#allocation10], %s387
          %390 = vsyncadd %s385, 0
          %s391 = smul.addr %s36, 2
          %s392 = smul.addr %s391, 4
          %s393 = scalar_lea.hbm %s2, %s392
          %s394 = sshll.u32 %s393, 4
          %s395 = int_to_ptr.hbm [resolvable:$true] %s394
          %s396 = sshll.u32 %s388, 4
          %s397 = int_to_ptr.vmem [resolvable:$true] %s396
          %402 = dma.hbm_to_vmem [thread:$0]  %s395, 128, %s397, %s385, 64, 64, 4
        $region44: #{tpu_custom_call.1} parent=31 // pred_fallthru
          _
      $region32: #{tpu_custom_call.1} parent=5 // pred_fallthru
        _
      %p403 = scmp.le.s32.totalorder 1, %s29
      %p404 = scmp.lt.s32.totalorder %s29, 3
      %p405 = pnand %p403, %p404
      %p406 = pneg %p405
      // Predicated region
      $region45: #{tpu_custom_call.1} parent=5 // pred_check
        _
      $region46: #{tpu_custom_call.1} parent=5 // pred_check_branch
        %408 = sbr.rel (%p405) target = $region48
      $region47: #{tpu_custom_call.1} parent=5 // pred_region
        %s409 = ssub.s32 %s29, 1
        %s410 = sand.u32 %s56, 1
        %s411 = scalar_lea.sflag [#allocation6], %s410
        %s412 = sand.u32 %s56, 1
        %s413 = smul.addr %s412, 8
        %s414 = scalar_lea.vmem [#allocation5], %s413
        // Predicated region
        $region49: #{tpu_custom_call.1} parent=47 // pred_check
          %p415 = pneg %p69
        $region50: #{tpu_custom_call.1} parent=47 // pred_check_branch
          %417 = sbr.rel (%p415) target = $region52
        $region51: #{tpu_custom_call.1} parent=47 // pred_region
          %419 = dma.done %s411, 128
        $region52: #{tpu_custom_call.1} parent=47 // pred_fallthru
          _
        %s420 = sand.u32 %s34, 1
        %s421 = scalar_lea.sflag [#allocation9], %s420
        %s422 = sand.u32 %s82, 1
        %s423 = smul.addr %s422, 8
        %s424 = scalar_lea.vmem [#allocation8], %s423
        // Predicated region
        $region53: #{tpu_custom_call.1} parent=47 // pred_check
          %p425 = pneg %p95
        $region54: #{tpu_custom_call.1} parent=47 // pred_check_branch
          %427 = sbr.rel (%p425) target = $region56
        $region55: #{tpu_custom_call.1} parent=47 // pred_region
          %429 = dma.done %s421, 128
        $region56: #{tpu_custom_call.1} parent=47 // pred_fallthru
          _
        %s430 = sand.u32 %s34, 1
        %s431 = scalar_lea.sflag [#allocation9], %s430
        %s432 = sand.u32 %s108, 1
        %s433 = smul.addr %s432, 8
        %s434 = scalar_lea.vmem [#allocation10], %s433
        // Predicated region
        $region57: #{tpu_custom_call.1} parent=47 // pred_check
          %p435 = pneg %p121
        $region58: #{tpu_custom_call.1} parent=47 // pred_check_branch
          %437 = sbr.rel (%p435) target = $region60
        $region59: #{tpu_custom_call.1} parent=47 // pred_region
          %439 = dma.done %s431, 128
        $region60: #{tpu_custom_call.1} parent=47 // pred_fallthru
          _
        // Predicated region
        $region61: #{tpu_custom_call.1} parent=47 // pred_check
          %p440 = pneg %p142
        $region62: #{tpu_custom_call.1} parent=47 // pred_check_branch
          %442 = sbr.rel (%p440) target = $region64
        $region63: #{tpu_custom_call.1} parent=47 // pred_region
          %444 = dma.done [#allocation12], 256
        $region64: #{tpu_custom_call.1} parent=47 // pred_fallthru
          _
        // Predicated region
        $region65: #{tpu_custom_call.1} parent=47 // pred_check
          %p445 = pneg %p163
        $region66: #{tpu_custom_call.1} parent=47 // pred_check_branch
          %447 = sbr.rel (%p445) target = $region68
        $region67: #{tpu_custom_call.1} parent=47 // pred_region
          %449 = dma.done [#allocation12], 256
        $region68: #{tpu_custom_call.1} parent=47 // pred_fallthru
          _
        // Predicated region
        $region69: #{tpu_custom_call.1} parent=47 // pred_check
          %p450 = pneg %p184
        $region70: #{tpu_custom_call.1} parent=47 // pred_check_branch
          %452 = sbr.rel (%p450) target = $region72
        $region71: #{tpu_custom_call.1} parent=47 // pred_region
          %454 = dma.done [#allocation15], 256
        $region72: #{tpu_custom_call.1} parent=47 // pred_fallthru
          _
        // Predicated region
        $region73: #{tpu_custom_call.1} parent=47 // pred_check
          %p455 = pneg %p205
        $region74: #{tpu_custom_call.1} parent=47 // pred_check_branch
          %457 = sbr.rel (%p455) target = $region76
        $region75: #{tpu_custom_call.1} parent=47 // pred_region
          %459 = dma.done [#allocation15], 256
        $region76: #{tpu_custom_call.1} parent=47 // pred_fallthru
          _
        %s460 = sand.u32 %s56, 1
        %s461 = scalar_lea.sflag [#allocation6], %s460
        %s462 = sand.u32 %s56, 1
        %s463 = smul.addr %s462, 8
        %s464 = scalar_lea.vmem [#allocation5], %s463
        %p465 = pneg %p69
        %p466 = pneg %p66
        %s467 = sand.u32 %s34, 1
        %s468 = scalar_lea.sflag [#allocation9], %s467
        %s469 = sand.u32 %s82, 1
        %s470 = smul.addr %s469, 8
        %s471 = scalar_lea.vmem [#allocation8], %s470
        %p472 = pneg %p95
        %p473 = pneg %p92
        %s474 = sand.u32 %s34, 1
        %s475 = scalar_lea.sflag [#allocation9], %s474
        %s476 = sand.u32 %s108, 1
        %s477 = smul.addr %s476, 8
        %s478 = scalar_lea.vmem [#allocation10], %s477
        %p479 = pneg %p121
        %p480 = pneg %p118
        %p481 = pneg %p142
        %p482 = pneg %p139
        %p483 = pneg %p163
        %p484 = pneg %p160
        %p485 = pneg %p184
        %p486 = pneg %p181
        %p487 = pneg %p205
        %p488 = pneg %p202
        %p489 = pneg %p233
        %p490 = pneg %p230
        %s491 = sand.u32 %s220, 1
        %s492 = scalar_lea.sflag [#allocation7], %s491
        %s493 = sand.u32 %s220, 1
        %s494 = smul.addr %s493, 8
        %s495 = scalar_lea.vmem [#allocation17], %s494
        %p496 = pneg %p261
        %p497 = pneg %p258
        %s498 = sand.u32 %s248, 1
        %s499 = scalar_lea.sflag [#allocation19], %s498
        %s500 = sand.u32 %s248, 1
        %s501 = smul.addr %s500, 8
        %s502 = scalar_lea.vmem [#allocation18], %s501
        %p504 = scmp.eq.s32.totalorder %s39, 0
        // Predicated region
        $region77: #{tpu_custom_call.1} parent=47 // pred_check
          %p505 = pneg %p504
        $region78: #{tpu_custom_call.1} parent=47 // pred_check_branch
          %507 = sbr.rel (%p505) target = $region80
        $region79: #{tpu_custom_call.1} parent=47 // pred_region
          %v508 = vld [vmem:[%s424] sm:$0xf]
          %v509 = vld [vmem:[#allocation13] sm:$0xf]
          %v510 = vld [vmem:[#allocation13 + $0x4] sm:$0xf]
          %v511 = vld [vmem:[#allocation13 + $0x8] sm:$0xf]
          %v512 = vld [vmem:[#allocation13 + $0xc] sm:$0xf]
          %v517 = vunpack.c.l.b16 %v509
          %v518 = vunpack.c.l.b16 %v510
          %v519 = vunpack.c.l.b16 %v511
          %v520 = vunpack.c.l.b16 %v512
          %v521 = vpack.c.b16 %v518, %v517
          %v522 = vpack.c.b16 %v520, %v519
          %vm525 = vcmask 261120
          %v527 = vsel %vm525, %v508, 0
          %529 = vmatpush.bf16.msra.mxu0 0
          %530 = vmatpush.bf16.msra.mxu0 0
          %531 = vmatpush.bf16.msra.mxu0 0
          %532 = vmatpush.bf16.msra.mxu0 0
          %533 = vmatpush.bf16.msra.mxu0 0
          %534 = vmatpush.bf16.msra.mxu0 0
          %535 = vmatpush.bf16.msra.mxu0 %v522
          %536 = vmatpush.bf16.msra.mxu0 %v521
          %537 = vmatmul.bf16.gmra.mxu0 %v527
          %v538 = vpop.f32.mrf.mxu0
          %v539 = vadd.f32 0.0, %v538
          %v540 = vpop.f32.mrf.mxu0
          %541 = vdwg.mxu0
          %v542 = vpack.c.bf16 %v539, %v539
          %vm543 = vcmask 257024
          %544 = vst.msk [vmem:[#allocation2] sm:$0xf] %vm543, %v542
          %s545 = scalar_lea.vmem %s424, 4 [#allocation8]
          %v546 = vld [vmem:[%s545] sm:$0xf]
          %v547 = vld [vmem:[#allocation13] sm:$0xf]
          %v548 = vld [vmem:[#allocation13 + $0x4] sm:$0xf]
          %v549 = vld [vmem:[#allocation13 + $0x8] sm:$0xf]
          %v550 = vld [vmem:[#allocation13 + $0xc] sm:$0xf]
          %v555 = vunpack.c.l.b16 %v547
          %v556 = vunpack.c.l.b16 %v548
          %v557 = vunpack.c.l.b16 %v549
          %v558 = vunpack.c.l.b16 %v550
          %v559 = vpack.c.b16 %v556, %v555
          %v560 = vpack.c.b16 %v558, %v557
          %v564 = vsel %vm525, %v546, 0
          %566 = vmatpush.bf16.msra.mxu0 0
          %567 = vmatpush.bf16.msra.mxu0 0
          %568 = vmatpush.bf16.msra.mxu0 0
          %569 = vmatpush.bf16.msra.mxu0 0
          %570 = vmatpush.bf16.msra.mxu0 0
          %571 = vmatpush.bf16.msra.mxu0 0
          %572 = vmatpush.bf16.msra.mxu0 %v560
          %573 = vmatpush.bf16.msra.mxu0 %v559
          %574 = vmatmul.bf16.gmra.mxu0 %v564
          %v575 = vpop.f32.mrf.mxu0
          %v576 = vadd.f32 0.0, %v575
          %v577 = vpop.f32.mrf.mxu0
          %578 = vdwg.mxu0
          %v579 = vpack.c.bf16 %v576, %v576
          %s580 = scalar_lea.vmem [#allocation2], 4
          %581 = vst.msk [vmem:[%s580] sm:$0xf] %vm543, %v579
          %v582 = vld [vmem:[%s434] sm:$0xf]
          %v583 = vld [vmem:[#allocation14] sm:$0xf]
          %v584 = vld [vmem:[#allocation14 + $0x4] sm:$0xf]
          %v585 = vld [vmem:[#allocation14 + $0x8] sm:$0xf]
          %v586 = vld [vmem:[#allocation14 + $0xc] sm:$0xf]
          %v591 = vunpack.c.l.b16 %v583
          %v592 = vunpack.c.l.b16 %v584
          %v593 = vunpack.c.l.b16 %v585
          %v594 = vunpack.c.l.b16 %v586
          %v595 = vpack.c.b16 %v592, %v591
          %v596 = vpack.c.b16 %v594, %v593
          %v600 = vsel %vm525, %v582, 0
          %602 = vmatpush.bf16.msra.mxu0 0
          %603 = vmatpush.bf16.msra.mxu0 0
          %604 = vmatpush.bf16.msra.mxu0 0
          %605 = vmatpush.bf16.msra.mxu0 0
          %606 = vmatpush.bf16.msra.mxu0 0
          %607 = vmatpush.bf16.msra.mxu0 0
          %608 = vmatpush.bf16.msra.mxu0 %v596
          %609 = vmatpush.bf16.msra.mxu0 %v595
          %610 = vmatmul.bf16.gmra.mxu0 %v600
          %v611 = vpop.f32.mrf.mxu0
          %v612 = vadd.f32 0.0, %v611
          %v613 = vpop.f32.mrf.mxu0
          %614 = vdwg.mxu0
          %v615 = vpack.c.bf16 %v612, %v612
          %616 = vst.msk [vmem:[#allocation3] sm:$0xf] %vm543, %v615
          %s617 = scalar_lea.vmem %s434, 4 [#allocation10]
          %v618 = vld [vmem:[%s617] sm:$0xf]
          %v619 = vld [vmem:[#allocation14] sm:$0xf]
          %v620 = vld [vmem:[#allocation14 + $0x4] sm:$0xf]
          %v621 = vld [vmem:[#allocation14 + $0x8] sm:$0xf]
          %v622 = vld [vmem:[#allocation14 + $0xc] sm:$0xf]
          %v627 = vunpack.c.l.b16 %v619
          %v628 = vunpack.c.l.b16 %v620
          %v629 = vunpack.c.l.b16 %v621
          %v630 = vunpack.c.l.b16 %v622
          %v631 = vpack.c.b16 %v628, %v627
          %v632 = vpack.c.b16 %v630, %v629
          %v636 = vsel %vm525, %v618, 0
          %638 = vmatpush.bf16.msra.mxu0 0
          %639 = vmatpush.bf16.msra.mxu0 0
          %640 = vmatpush.bf16.msra.mxu0 0
          %641 = vmatpush.bf16.msra.mxu0 0
          %642 = vmatpush.bf16.msra.mxu0 0
          %643 = vmatpush.bf16.msra.mxu0 0
          %644 = vmatpush.bf16.msra.mxu0 %v632
          %645 = vmatpush.bf16.msra.mxu0 %v631
          %646 = vmatmul.bf16.gmra.mxu0 %v636
          %v647 = vpop.f32.mrf.mxu0
          %v648 = vadd.f32 0.0, %v647
          %v649 = vpop.f32.mrf.mxu0
          %650 = vdwg.mxu0
          %v651 = vpack.c.bf16 %v648, %v648
          %s652 = scalar_lea.vmem [#allocation3], 4
          %653 = vst.msk [vmem:[%s652] sm:$0xf] %vm543, %v651
        $region80: #{tpu_custom_call.1} parent=47 // pred_fallthru
          _
        %v654 = vld [vmem:[#allocation2] sm:$0xf]
        %s655 = scalar_lea.vmem [#allocation2], 4
        %v656 = vld [vmem:[%s655] sm:$0xf]
        %v657 = vld [vmem:[#allocation3] sm:$0xf]
        %s658 = scalar_lea.vmem [#allocation3], 4
        %v659 = vld [vmem:[%s658] sm:$0xf]
        %v660 = vld [vmem:[%s414] sm:$0xf]
        %v661 = vld [vmem:[#allocation11] sm:$0xf]
        %v662 = vld [vmem:[#allocation11 + $0x4] sm:$0xf]
        %v663 = vld [vmem:[#allocation11 + $0x8] sm:$0xf]
        %v664 = vld [vmem:[#allocation11 + $0xc] sm:$0xf]
        %v669 = vunpack.c.l.b16 %v661
        %v670 = vunpack.c.l.b16 %v662
        %v671 = vunpack.c.l.b16 %v663
        %v672 = vunpack.c.l.b16 %v664
        %v673 = vpack.c.b16 %v670, %v669
        %v674 = vpack.c.b16 %v672, %v671
        %vm677 = vcmask 261120
        %v679 = vsel %vm677, %v660, 0
        %681 = vmatpush.bf16.msra.mxu0 0
        %682 = vmatpush.bf16.msra.mxu0 0
        %683 = vmatpush.bf16.msra.mxu0 0
        %684 = vmatpush.bf16.msra.mxu0 0
        %685 = vmatpush.bf16.msra.mxu0 0
        %686 = vmatpush.bf16.msra.mxu0 0
        %687 = vmatpush.bf16.msra.mxu0 %v674
        %688 = vmatpush.bf16.msra.mxu0 %v673
        %689 = vmatmul.bf16.gmra.mxu0 %v679
        %v690 = vpop.f32.mrf.mxu0
        %v691 = vadd.f32 0.0, %v690
        %v692 = vpop.f32.mrf.mxu0
        %693 = vdwg.mxu0
        %v694 = vpack.c.bf16 %v691, %v691
        %s695 = scalar_lea.vmem %s414, 4 [#allocation5]
        %v696 = vld [vmem:[%s695] sm:$0xf]
        %v698 = vsel %vm677, %v696, 0
        %700 = vmatpush.bf16.msra.mxu0 0
        %701 = vmatpush.bf16.msra.mxu0 0
        %702 = vmatpush.bf16.msra.mxu0 0
        %703 = vmatpush.bf16.msra.mxu0 0
        %704 = vmatpush.bf16.msra.mxu0 0
        %705 = vmatpush.bf16.msra.mxu0 0
        %706 = vmatpush.bf16.msra.mxu0 %v674
        %707 = vmatpush.bf16.msra.mxu0 %v673
        %708 = vmatmul.bf16.gmra.mxu0 %v698
        %v709 = vpop.f32.mrf.mxu0
        %v710 = vadd.f32 0.0, %v709
        %v711 = vpop.f32.mrf.mxu0
        %712 = vdwg.mxu0
        %v713 = vpack.c.bf16 %v710, %v710
        %vm714 = vcmask 64512
        %v716 = vsel %vm714, %v694, 0
        %v719 = vsel %vm714, %v654, 0
        %721 = vmatpush.bf16.xpose.msra.mxu0 0
        %722 = vmatpush.bf16.xpose.msra.mxu0 0
        %723 = vmatpush.bf16.xpose.msra.mxu0 0
        %724 = vmatpush.bf16.xpose.msra.mxu0 0
        %725 = vmatpush.bf16.xpose.msra.mxu0 0
        %726 = vmatpush.bf16.xpose.msra.mxu0 0
        %727 = vmatpush.bf16.xpose.msra.mxu0 0
        %728 = vmatpush.bf16.xpose.msra.mxu0 %v719
        %729 = vmatmul.bf16.gmra.mxu0 %v716
        %v730 = vpop.f32.mrf.mxu0
        %v731 = vadd.f32 0.0, %v730
        %v732 = vpop.f32.mrf.mxu0
        %733 = vdwg.mxu0
        %v735 = vsel %vm714, %v713, 0
        %v738 = vsel %vm714, %v656, 0
        %740 = vmatpush.bf16.xpose.msra.mxu0 0
        %741 = vmatpush.bf16.xpose.msra.mxu0 0
        %742 = vmatpush.bf16.xpose.msra.mxu0 0
        %743 = vmatpush.bf16.xpose.msra.mxu0 0
        %744 = vmatpush.bf16.xpose.msra.mxu0 0
        %745 = vmatpush.bf16.xpose.msra.mxu0 0
        %746 = vmatpush.bf16.xpose.msra.mxu0 0
        %747 = vmatpush.bf16.xpose.msra.mxu0 %v738
        %748 = vmatmul.bf16.gmra.mxu0 %v735
        %v749 = vpop.f32.mrf.mxu0
        %v750 = vadd.f32 0.0, %v749
        %v751 = vpop.f32.mrf.mxu0
        %752 = vdwg.mxu0
        %753 = vmatpush.bf16.xpose.msra.mxu0 0
        %754 = vmatpush.bf16.xpose.msra.mxu0 0
        %755 = vmatpush.bf16.xpose.msra.mxu0 0
        %756 = vmatpush.bf16.xpose.msra.mxu0 0
        %757 = vmatpush.bf16.xpose.msra.mxu0 0
        %758 = vmatpush.bf16.xpose.msra.mxu0 0
        %759 = vmatpush.bf16.xpose.msra.mxu0 0
        %760 = vmatpush.bf16.xpose.msra.mxu0 %v719
        %761 = vmatmul.bf16.gmra.mxu0 %v735
        %v762 = vpop.f32.mrf.mxu0
        %v763 = vadd.f32 0.0, %v762
        %v764 = vpop.f32.mrf.mxu0
        %765 = vdwg.mxu0
        %v766 = vsub.f32 %v731, %v750
        %767 = vmatpush.bf16.xpose.msra.mxu0 0
        %768 = vmatpush.bf16.xpose.msra.mxu0 0
        %769 = vmatpush.bf16.xpose.msra.mxu0 0
        %770 = vmatpush.bf16.xpose.msra.mxu0 0
        %771 = vmatpush.bf16.xpose.msra.mxu0 0
        %772 = vmatpush.bf16.xpose.msra.mxu0 0
        %773 = vmatpush.bf16.xpose.msra.mxu0 0
        %774 = vmatpush.bf16.xpose.msra.mxu0 %v738
        %775 = vmatmul.bf16.gmra.mxu0 %v716
        %v776 = vpop.f32.mrf.mxu0
        %v777 = vadd.f32 %v763, %v776
        %v778 = vpop.f32.mrf.mxu0
        %779 = vdwg.mxu0
        %v780 = vmul.f32 %v766, %v766
        %v781 = vmul.f32 %v777, %v777
        %v782 = vadd.f32 %v780, %v781
        %v783 = vrsqrt.pop %v782
        %v784 = vmul.f32 %v783, %v782
        %v785 = vmul.f32 %v784, %v783
        %v786 = vmul.f32 0.5, %v785
        %v787 = vsub.f32 1.5, %v786
        %v788 = vmul.f32 %v783, %v787
        %v789 = vmul.f32 %v782, %v788
        %vm790 = vcmp.eq.f32.partialorder %v782, inf
        %v791 = vsel %vm790, %v782, %v789
        %vm792 = vcmp.eq.f32.partialorder %v782, 0.0
        %v793 = vand.u32 %v782, 2147483648
        %v794 = vsel %vm792, %v793, %v791
        %v795 = vmul.f32 %v794, 0.25
        %v796 = vsel %vm714, %v795, -inf
        %797 = vmax.xlane.f32.xlu0 %v796
        %v798 = vpop.xlane.xlu0 %797
        %v799 = vsub.f32 %v795, %v798
        %v800 = vmul.f32 %v799, 1.442695
        %v801 = vpow.pop %v800
        %v802 = vsel %vm714, %v801, 0.0
        %803 = vadd.xlane.f32.xlu0 %v802
        %v804 = vpop.xlane.xlu0 %803
        %v805 = vrcp.pop %v804
        %v806 = vmul.f32 %v801, %v805
        %v807 = vpack.c.bf16 %v806, %v806
        %v809 = vsel %vm714, %v807, 0
        %vm811 = vcmask 1043456
        %v813 = vsel %vm811, %v657, 0
        %815 = vmatpush.bf16.msra.mxu0 0
        %816 = vmatpush.bf16.msra.mxu0 0
        %817 = vmatpush.bf16.msra.mxu0 0
        %818 = vmatpush.bf16.msra.mxu0 0
        %819 = vmatpush.bf16.msra.mxu0 0
        %820 = vmatpush.bf16.msra.mxu0 0
        %821 = vmatpush.bf16.msra.mxu0 0
        %822 = vmatpush.bf16.msra.mxu0 %v813
        %823 = vmatmul.bf16.gmra.mxu0 %v809
        %v824 = vpop.f32.mrf.mxu0
        %v825 = vadd.f32 0.0, %v824
        %v826 = vpop.f32.mrf.mxu0
        %827 = vdwg.mxu0
        %v829 = vsel %vm811, %v659, 0
        %831 = vmatpush.bf16.msra.mxu0 0
        %832 = vmatpush.bf16.msra.mxu0 0
        %833 = vmatpush.bf16.msra.mxu0 0
        %834 = vmatpush.bf16.msra.mxu0 0
        %835 = vmatpush.bf16.msra.mxu0 0
        %836 = vmatpush.bf16.msra.mxu0 0
        %837 = vmatpush.bf16.msra.mxu0 0
        %838 = vmatpush.bf16.msra.mxu0 %v829
        %839 = vmatmul.bf16.gmra.mxu0 %v809
        %v840 = vpop.f32.mrf.mxu0
        %v841 = vadd.f32 0.0, %v840
        %v842 = vpop.f32.mrf.mxu0
        %843 = vdwg.mxu0
        %v844 = vpack.c.bf16 %v825, %v825
        %vm845 = vcmask 60416
        %846 = vst.msk [vmem:[#allocation4] sm:$0xf] %vm845, %v844
        %v847 = vpack.c.bf16 %v841, %v841
        %848 = vst.msk [vmem:[#allocation4 + $0x4] sm:$0xf] %vm845, %v847
        %v850 = vunpack.c.l.b16 %v694
        %v851 = vpack.c.b16 %v850, %v850
        %852 = vrot.lane.b32.xlu0 %v851, 120
        %v853 = vpop.permute.xlu0 %852
        %v855 = vunpack.c.l.b16 %v654
        %v856 = vpack.c.b16 %v855, %v855
        %857 = vrot.lane.b32.xlu0 %v856, 120
        %v858 = vpop.permute.xlu0 %857
        %v860 = vsel %vm714, %v853, 0
        %v863 = vsel %vm714, %v858, 0
        %865 = vmatpush.bf16.xpose.msra.mxu0 0
        %866 = vmatpush.bf16.xpose.msra.mxu0 0
        %867 = vmatpush.bf16.xpose.msra.mxu0 0
        %868 = vmatpush.bf16.xpose.msra.mxu0 0
        %869 = vmatpush.bf16.xpose.msra.mxu0 0
        %870 = vmatpush.bf16.xpose.msra.mxu0 0
        %871 = vmatpush.bf16.xpose.msra.mxu0 0
        %872 = vmatpush.bf16.xpose.msra.mxu0 %v863
        %873 = vmatmul.bf16.gmra.mxu0 %v860
        %v874 = vpop.f32.mrf.mxu0
        %v875 = vadd.f32 0.0, %v874
        %v876 = vpop.f32.mrf.mxu0
        %877 = vdwg.mxu0
        %v879 = vunpack.c.l.b16 %v713
        %v880 = vpack.c.b16 %v879, %v879
        %881 = vrot.lane.b32.xlu0 %v880, 120
        %v882 = vpop.permute.xlu0 %881
        %v884 = vunpack.c.l.b16 %v656
        %v885 = vpack.c.b16 %v884, %v884
        %886 = vrot.lane.b32.xlu0 %v885, 120
        %v887 = vpop.permute.xlu0 %886
        %v889 = vsel %vm714, %v882, 0
        %v892 = vsel %vm714, %v887, 0
        %894 = vmatpush.bf16.xpose.msra.mxu0 0
        %895 = vmatpush.bf16.xpose.msra.mxu0 0
        %896 = vmatpush.bf16.xpose.msra.mxu0 0
        %897 = vmatpush.bf16.xpose.msra.mxu0 0
        %898 = vmatpush.bf16.xpose.msra.mxu0 0
        %899 = vmatpush.bf16.xpose.msra.mxu0 0
        %900 = vmatpush.bf16.xpose.msra.mxu0 0
        %901 = vmatpush.bf16.xpose.msra.mxu0 %v892
        %902 = vmatmul.bf16.gmra.mxu0 %v889
        %v903 = vpop.f32.mrf.mxu0
        %v904 = vadd.f32 0.0, %v903
        %v905 = vpop.f32.mrf.mxu0
        %906 = vdwg.mxu0
        %907 = vmatpush.bf16.xpose.msra.mxu0 0
        %908 = vmatpush.bf16.xpose.msra.mxu0 0
        %909 = vmatpush.bf16.xpose.msra.mxu0 0
        %910 = vmatpush.bf16.xpose.msra.mxu0 0
        %911 = vmatpush.bf16.xpose.msra.mxu0 0
        %912 = vmatpush.bf16.xpose.msra.mxu0 0
        %913 = vmatpush.bf16.xpose.msra.mxu0 0
        %914 = vmatpush.bf16.xpose.msra.mxu0 %v863
        %915 = vmatmul.bf16.gmra.mxu0 %v889
        %v916 = vpop.f32.mrf.mxu0
        %v917 = vadd.f32 0.0, %v916
        %v918 = vpop.f32.mrf.mxu0
        %919 = vdwg.mxu0
        %v920 = vsub.f32 %v875, %v904
        %921 = vmatpush.bf16.xpose.msra.mxu0 0
        %922 = vmatpush.bf16.xpose.msra.mxu0 0
        %923 = vmatpush.bf16.xpose.msra.mxu0 0
        %924 = vmatpush.bf16.xpose.msra.mxu0 0
        %925 = vmatpush.bf16.xpose.msra.mxu0 0
        %926 = vmatpush.bf16.xpose.msra.mxu0 0
        %927 = vmatpush.bf16.xpose.msra.mxu0 0
        %928 = vmatpush.bf16.xpose.msra.mxu0 %v892
        %929 = vmatmul.bf16.gmra.mxu0 %v860
        %v930 = vpop.f32.mrf.mxu0
        %v931 = vadd.f32 %v917, %v930
        %v932 = vpop.f32.mrf.mxu0
        %933 = vdwg.mxu0
        %v934 = vmul.f32 %v920, %v920
        %v935 = vmul.f32 %v931, %v931
        %v936 = vadd.f32 %v934, %v935
        %v937 = vrsqrt.pop %v936
        %v938 = vmul.f32 %v937, %v936
        %v939 = vmul.f32 %v938, %v937
        %v940 = vmul.f32 0.5, %v939
        %v941 = vsub.f32 1.5, %v940
        %v942 = vmul.f32 %v937, %v941
        %v943 = vmul.f32 %v936, %v942
        %vm944 = vcmp.eq.f32.partialorder %v936, inf
        %v945 = vsel %vm944, %v936, %v943
        %vm946 = vcmp.eq.f32.partialorder %v936, 0.0
        %v947 = vand.u32 %v936, 2147483648
        %v948 = vsel %vm946, %v947, %v945
        %v949 = vmul.f32 %v948, 0.25
        %v950 = vsel %vm714, %v949, -inf
        %951 = vmax.xlane.f32.xlu0 %v950
        %v952 = vpop.xlane.xlu0 %951
        %v953 = vsub.f32 %v949, %v952
        %v954 = vmul.f32 %v953, 1.442695
        %v955 = vpow.pop %v954
        %v956 = vsel %vm714, %v955, 0.0
        %957 = vadd.xlane.f32.xlu0 %v956
        %v958 = vpop.xlane.xlu0 %957
        %v959 = vrcp.pop %v958
        %v960 = vmul.f32 %v955, %v959
        %v961 = vpack.c.bf16 %v960, %v960
        %v963 = vunpack.c.l.b16 %v657
        %v964 = vpack.c.b16 %v963, %v963
        %965 = vrot.lane.b32.xlu0 %v964, 120
        %v966 = vpop.permute.xlu0 %965
        %v968 = vsel %vm714, %v961, 0
        %v971 = vsel %vm811, %v966, 0
        %973 = vmatpush.bf16.msra.mxu0 0
        %974 = vmatpush.bf16.msra.mxu0 0
        %975 = vmatpush.bf16.msra.mxu0 0
        %976 = vmatpush.bf16.msra.mxu0 0
        %977 = vmatpush.bf16.msra.mxu0 0
        %978 = vmatpush.bf16.msra.mxu0 0
        %979 = vmatpush.bf16.msra.mxu0 0
        %980 = vmatpush.bf16.msra.mxu0 %v971
        %981 = vmatmul.bf16.gmra.mxu0 %v968
        %v982 = vpop.f32.mrf.mxu0
        %v983 = vadd.f32 0.0, %v982
        %v984 = vpop.f32.mrf.mxu0
        %985 = vdwg.mxu0
        %v987 = vunpack.c.l.b16 %v659
        %v988 = vpack.c.b16 %v987, %v987
        %989 = vrot.lane.b32.xlu0 %v988, 120
        %v990 = vpop.permute.xlu0 %989
        %v992 = vsel %vm811, %v990, 0
        %994 = vmatpush.bf16.msra.mxu0 0
        %995 = vmatpush.bf16.msra.mxu0 0
        %996 = vmatpush.bf16.msra.mxu0 0
        %997 = vmatpush.bf16.msra.mxu0 0
        %998 = vmatpush.bf16.msra.mxu0 0
        %999 = vmatpush.bf16.msra.mxu0 0
        %1000 = vmatpush.bf16.msra.mxu0 0
        %1001 = vmatpush.bf16.msra.mxu0 %v992
        %1002 = vmatmul.bf16.gmra.mxu0 %v968
        %v1003 = vpop.f32.mrf.mxu0
        %v1004 = vadd.f32 0.0, %v1003
        %v1005 = vpop.f32.mrf.mxu0
        %1006 = vdwg.mxu0
        %v1007 = vpack.c.bf16 %v983, %v983
        %1009 = vrot.lane.b32.xlu0 %v1007, 8
        %v1010 = vpop.permute.xlu0 %1009
        %vm1012 = vcmask 126016
        %1013 = vst.msk [vmem:[#allocation4] sm:$0xf] %vm1012, %v1010
        %v1014 = vpack.c.bf16 %v1004, %v1004
        %1016 = vrot.lane.b32.xlu0 %v1014, 8
        %v1017 = vpop.permute.xlu0 %1016
        %1019 = vst.msk [vmem:[#allocation4 + $0x4] sm:$0xf] %vm1012, %v1017
        %1020 = vrot.lane.b32.xlu0 %v851, 112
        %v1021 = vpop.permute.xlu0 %1020
        %1022 = vrot.lane.b32.xlu0 %v856, 112
        %v1023 = vpop.permute.xlu0 %1022
        %v1025 = vsel %vm714, %v1021, 0
        %v1028 = vsel %vm714, %v1023, 0
        %1030 = vmatpush.bf16.xpose.msra.mxu0 0
        %1031 = vmatpush.bf16.xpose.msra.mxu0 0
        %1032 = vmatpush.bf16.xpose.msra.mxu0 0
        %1033 = vmatpush.bf16.xpose.msra.mxu0 0
        %1034 = vmatpush.bf16.xpose.msra.mxu0 0
        %1035 = vmatpush.bf16.xpose.msra.mxu0 0
        %1036 = vmatpush.bf16.xpose.msra.mxu0 0
        %1037 = vmatpush.bf16.xpose.msra.mxu0 %v1028
        %1038 = vmatmul.bf16.gmra.mxu0 %v1025
        %v1039 = vpop.f32.mrf.mxu0
        %v1040 = vadd.f32 0.0, %v1039
        %v1041 = vpop.f32.mrf.mxu0
        %1042 = vdwg.mxu0
        %1043 = vrot.lane.b32.xlu0 %v880, 112
        %v1044 = vpop.permute.xlu0 %1043
        %1045 = vrot.lane.b32.xlu0 %v885, 112
        %v1046 = vpop.permute.xlu0 %1045
        %v1048 = vsel %vm714, %v1044, 0
        %v1051 = vsel %vm714, %v1046, 0
        %1053 = vmatpush.bf16.xpose.msra.mxu0 0
        %1054 = vmatpush.bf16.xpose.msra.mxu0 0
        %1055 = vmatpush.bf16.xpose.msra.mxu0 0
        %1056 = vmatpush.bf16.xpose.msra.mxu0 0
        %1057 = vmatpush.bf16.xpose.msra.mxu0 0
        %1058 = vmatpush.bf16.xpose.msra.mxu0 0
        %1059 = vmatpush.bf16.xpose.msra.mxu0 0
        %1060 = vmatpush.bf16.xpose.msra.mxu0 %v1051
        %1061 = vmatmul.bf16.gmra.mxu0 %v1048
        %v1062 = vpop.f32.mrf.mxu0
        %v1063 = vadd.f32 0.0, %v1062
        %v1064 = vpop.f32.mrf.mxu0
        %1065 = vdwg.mxu0
        %1066 = vmatpush.bf16.xpose.msra.mxu0 0
        %1067 = vmatpush.bf16.xpose.msra.mxu0 0
        %1068 = vmatpush.bf16.xpose.msra.mxu0 0
        %1069 = vmatpush.bf16.xpose.msra.mxu0 0
        %1070 = vmatpush.bf16.xpose.msra.mxu0 0
        %1071 = vmatpush.bf16.xpose.msra.mxu0 0
        %1072 = vmatpush.bf16.xpose.msra.mxu0 0
        %1073 = vmatpush.bf16.xpose.msra.mxu0 %v1028
        %1074 = vmatmul.bf16.gmra.mxu0 %v1048
        %v1075 = vpop.f32.mrf.mxu0
        %v1076 = vadd.f32 0.0, %v1075
        %v1077 = vpop.f32.mrf.mxu0
        %1078 = vdwg.mxu0
        %v1079 = vsub.f32 %v1040, %v1063
        %1080 = vmatpush.bf16.xpose.msra.mxu0 0
        %1081 = vmatpush.bf16.xpose.msra.mxu0 0
        %1082 = vmatpush.bf16.xpose.msra.mxu0 0
        %1083 = vmatpush.bf16.xpose.msra.mxu0 0
        %1084 = vmatpush.bf16.xpose.msra.mxu0 0
        %1085 = vmatpush.bf16.xpose.msra.mxu0 0
        %1086 = vmatpush.bf16.xpose.msra.mxu0 0
        %1087 = vmatpush.bf16.xpose.msra.mxu0 %v1051
        %1088 = vmatmul.bf16.gmra.mxu0 %v1025
        %v1089 = vpop.f32.mrf.mxu0
        %v1090 = vadd.f32 %v1076, %v1089
        %v1091 = vpop.f32.mrf.mxu0
        %1092 = vdwg.mxu0
        %v1093 = vmul.f32 %v1079, %v1079
        %v1094 = vmul.f32 %v1090, %v1090
        %v1095 = vadd.f32 %v1093, %v1094
        %v1096 = vrsqrt.pop %v1095
        %v1097 = vmul.f32 %v1096, %v1095
        %v1098 = vmul.f32 %v1097, %v1096
        %v1099 = vmul.f32 0.5, %v1098
        %v1100 = vsub.f32 1.5, %v1099
        %v1101 = vmul.f32 %v1096, %v1100
        %v1102 = vmul.f32 %v1095, %v1101
        %vm1103 = vcmp.eq.f32.partialorder %v1095, inf
        %v1104 = vsel %vm1103, %v1095, %v1102
        %vm1105 = vcmp.eq.f32.partialorder %v1095, 0.0
        %v1106 = vand.u32 %v1095, 2147483648
        %v1107 = vsel %vm1105, %v1106, %v1104
        %v1108 = vmul.f32 %v1107, 0.25
        %v1109 = vsel %vm714, %v1108, -inf
        %1110 = vmax.xlane.f32.xlu0 %v1109
        %v1111 = vpop.xlane.xlu0 %1110
        %v1112 = vsub.f32 %v1108, %v1111
        %v1113 = vmul.f32 %v1112, 1.442695
        %v1114 = vpow.pop %v1113
        %v1115 = vsel %vm714, %v1114, 0.0
        %1116 = vadd.xlane.f32.xlu0 %v1115
        %v1117 = vpop.xlane.xlu0 %1116
        %v1118 = vrcp.pop %v1117
        %v1119 = vmul.f32 %v1114, %v1118
        %v1120 = vpack.c.bf16 %v1119, %v1119
        %1121 = vrot.lane.b32.xlu0 %v964, 112
        %v1122 = vpop.permute.xlu0 %1121
        %v1124 = vsel %vm714, %v1120, 0
        %v1127 = vsel %vm811, %v1122, 0
        %1129 = vmatpush.bf16.msra.mxu0 0
        %1130 = vmatpush.bf16.msra.mxu0 0
        %1131 = vmatpush.bf16.msra.mxu0 0
        %1132 = vmatpush.bf16.msra.mxu0 0
        %1133 = vmatpush.bf16.msra.mxu0 0
        %1134 = vmatpush.bf16.msra.mxu0 0
        %1135 = vmatpush.bf16.msra.mxu0 0
        %1136 = vmatpush.bf16.msra.mxu0 %v1127
        %1137 = vmatmul.bf16.gmra.mxu0 %v1124
        %v1138 = vpop.f32.mrf.mxu0
        %v1139 = vadd.f32 0.0, %v1138
        %v1140 = vpop.f32.mrf.mxu0
        %1141 = vdwg.mxu0
        %1142 = vrot.lane.b32.xlu0 %v988, 112
        %v1143 = vpop.permute.xlu0 %1142
        %v1145 = vsel %vm811, %v1143, 0
        %1147 = vmatpush.bf16.msra.mxu0 0
        %1148 = vmatpush.bf16.msra.mxu0 0
        %1149 = vmatpush.bf16.msra.mxu0 0
        %1150 = vmatpush.bf16.msra.mxu0 0
        %1151 = vmatpush.bf16.msra.mxu0 0
        %1152 = vmatpush.bf16.msra.mxu0 0
        %1153 = vmatpush.bf16.msra.mxu0 0
        %1154 = vmatpush.bf16.msra.mxu0 %v1145
        %1155 = vmatmul.bf16.gmra.mxu0 %v1124
        %v1156 = vpop.f32.mrf.mxu0
        %v1157 = vadd.f32 0.0, %v1156
        %v1158 = vpop.f32.mrf.mxu0
        %1159 = vdwg.mxu0
        %v1160 = vpack.c.bf16 %v1139, %v1139
        %1162 = vrot.lane.b32.xlu0 %v1160, 16
        %v1163 = vpop.permute.xlu0 %1162
        %vm1165 = vcmask 191616
        %1166 = vst.msk [vmem:[#allocation4] sm:$0xf] %vm1165, %v1163
        %v1167 = vpack.c.bf16 %v1157, %v1157
        %1169 = vrot.lane.b32.xlu0 %v1167, 16
        %v1170 = vpop.permute.xlu0 %1169
        %1172 = vst.msk [vmem:[#allocation4 + $0x4] sm:$0xf] %vm1165, %v1170
        %1173 = vrot.lane.b32.xlu0 %v851, 104
        %v1174 = vpop.permute.xlu0 %1173
        %1175 = vrot.lane.b32.xlu0 %v856, 104
        %v1176 = vpop.permute.xlu0 %1175
        %v1178 = vsel %vm714, %v1174, 0
        %v1181 = vsel %vm714, %v1176, 0
        %1183 = vmatpush.bf16.xpose.msra.mxu0 0
        %1184 = vmatpush.bf16.xpose.msra.mxu0 0
        %1185 = vmatpush.bf16.xpose.msra.mxu0 0
        %1186 = vmatpush.bf16.xpose.msra.mxu0 0
        %1187 = vmatpush.bf16.xpose.msra.mxu0 0
        %1188 = vmatpush.bf16.xpose.msra.mxu0 0
        %1189 = vmatpush.bf16.xpose.msra.mxu0 0
        %1190 = vmatpush.bf16.xpose.msra.mxu0 %v1181
        %1191 = vmatmul.bf16.gmra.mxu0 %v1178
        %v1192 = vpop.f32.mrf.mxu0
        %v1193 = vadd.f32 0.0, %v1192
        %v1194 = vpop.f32.mrf.mxu0
        %1195 = vdwg.mxu0
        %1196 = vrot.lane.b32.xlu0 %v880, 104
        %v1197 = vpop.permute.xlu0 %1196
        %1198 = vrot.lane.b32.xlu0 %v885, 104
        %v1199 = vpop.permute.xlu0 %1198
        %v1201 = vsel %vm714, %v1197, 0
        %v1204 = vsel %vm714, %v1199, 0
        %1206 = vmatpush.bf16.xpose.msra.mxu0 0
        %1207 = vmatpush.bf16.xpose.msra.mxu0 0
        %1208 = vmatpush.bf16.xpose.msra.mxu0 0
        %1209 = vmatpush.bf16.xpose.msra.mxu0 0
        %1210 = vmatpush.bf16.xpose.msra.mxu0 0
        %1211 = vmatpush.bf16.xpose.msra.mxu0 0
        %1212 = vmatpush.bf16.xpose.msra.mxu0 0
        %1213 = vmatpush.bf16.xpose.msra.mxu0 %v1204
        %1214 = vmatmul.bf16.gmra.mxu0 %v1201
        %v1215 = vpop.f32.mrf.mxu0
        %v1216 = vadd.f32 0.0, %v1215
        %v1217 = vpop.f32.mrf.mxu0
        %1218 = vdwg.mxu0
        %1219 = vmatpush.bf16.xpose.msra.mxu0 0
        %1220 = vmatpush.bf16.xpose.msra.mxu0 0
        %1221 = vmatpush.bf16.xpose.msra.mxu0 0
        %1222 = vmatpush.bf16.xpose.msra.mxu0 0
        %1223 = vmatpush.bf16.xpose.msra.mxu0 0
        %1224 = vmatpush.bf16.xpose.msra.mxu0 0
        %1225 = vmatpush.bf16.xpose.msra.mxu0 0
        %1226 = vmatpush.bf16.xpose.msra.mxu0 %v1181
        %1227 = vmatmul.bf16.gmra.mxu0 %v1201
        %v1228 = vpop.f32.mrf.mxu0
        %v1229 = vadd.f32 0.0, %v1228
        %v1230 = vpop.f32.mrf.mxu0
        %1231 = vdwg.mxu0
        %v1232 = vsub.f32 %v1193, %v1216
        %1233 = vmatpush.bf16.xpose.msra.mxu0 0
        %1234 = vmatpush.bf16.xpose.msra.mxu0 0
        %1235 = vmatpush.bf16.xpose.msra.mxu0 0
        %1236 = vmatpush.bf16.xpose.msra.mxu0 0
        %1237 = vmatpush.bf16.xpose.msra.mxu0 0
        %1238 = vmatpush.bf16.xpose.msra.mxu0 0
        %1239 = vmatpush.bf16.xpose.msra.mxu0 0
        %1240 = vmatpush.bf16.xpose.msra.mxu0 %v1204
        %1241 = vmatmul.bf16.gmra.mxu0 %v1178
        %v1242 = vpop.f32.mrf.mxu0
        %v1243 = vadd.f32 %v1229, %v1242
        %v1244 = vpop.f32.mrf.mxu0
        %1245 = vdwg.mxu0
        %v1246 = vmul.f32 %v1232, %v1232
        %v1247 = vmul.f32 %v1243, %v1243
        %v1248 = vadd.f32 %v1246, %v1247
        %v1249 = vrsqrt.pop %v1248
        %v1250 = vmul.f32 %v1249, %v1248
        %v1251 = vmul.f32 %v1250, %v1249
        %v1252 = vmul.f32 0.5, %v1251
        %v1253 = vsub.f32 1.5, %v1252
        %v1254 = vmul.f32 %v1249, %v1253
        %v1255 = vmul.f32 %v1248, %v1254
        %vm1256 = vcmp.eq.f32.partialorder %v1248, inf
        %v1257 = vsel %vm1256, %v1248, %v1255
        %vm1258 = vcmp.eq.f32.partialorder %v1248, 0.0
        %v1259 = vand.u32 %v1248, 2147483648
        %v1260 = vsel %vm1258, %v1259, %v1257
        %v1261 = vmul.f32 %v1260, 0.25
        %v1262 = vsel %vm714, %v1261, -inf
        %1263 = vmax.xlane.f32.xlu0 %v1262
        %v1264 = vpop.xlane.xlu0 %1263
        %v1265 = vsub.f32 %v1261, %v1264
        %v1266 = vmul.f32 %v1265, 1.442695
        %v1267 = vpow.pop %v1266
        %v1268 = vsel %vm714, %v1267, 0.0
        %1269 = vadd.xlane.f32.xlu0 %v1268
        %v1270 = vpop.xlane.xlu0 %1269
        %v1271 = vrcp.pop %v1270
        %v1272 = vmul.f32 %v1267, %v1271
        %v1273 = vpack.c.bf16 %v1272, %v1272
        %1274 = vrot.lane.b32.xlu0 %v964, 104
        %v1275 = vpop.permute.xlu0 %1274
        %v1277 = vsel %vm714, %v1273, 0
        %v1280 = vsel %vm811, %v1275, 0
        %1282 = vmatpush.bf16.msra.mxu0 0
        %1283 = vmatpush.bf16.msra.mxu0 0
        %1284 = vmatpush.bf16.msra.mxu0 0
        %1285 = vmatpush.bf16.msra.mxu0 0
        %1286 = vmatpush.bf16.msra.mxu0 0
        %1287 = vmatpush.bf16.msra.mxu0 0
        %1288 = vmatpush.bf16.msra.mxu0 0
        %1289 = vmatpush.bf16.msra.mxu0 %v1280
        %1290 = vmatmul.bf16.gmra.mxu0 %v1277
        %v1291 = vpop.f32.mrf.mxu0
        %v1292 = vadd.f32 0.0, %v1291
        %v1293 = vpop.f32.mrf.mxu0
        %1294 = vdwg.mxu0
        %1295 = vrot.lane.b32.xlu0 %v988, 104
        %v1296 = vpop.permute.xlu0 %1295
        %v1298 = vsel %vm811, %v1296, 0
        %1300 = vmatpush.bf16.msra.mxu0 0
        %1301 = vmatpush.bf16.msra.mxu0 0
        %1302 = vmatpush.bf16.msra.mxu0 0
        %1303 = vmatpush.bf16.msra.mxu0 0
        %1304 = vmatpush.bf16.msra.mxu0 0
        %1305 = vmatpush.bf16.msra.mxu0 0
        %1306 = vmatpush.bf16.msra.mxu0 0
        %1307 = vmatpush.bf16.msra.mxu0 %v1298
        %1308 = vmatmul.bf16.gmra.mxu0 %v1277
        %v1309 = vpop.f32.mrf.mxu0
        %v1310 = vadd.f32 0.0, %v1309
        %v1311 = vpop.f32.mrf.mxu0
        %1312 = vdwg.mxu0
        %v1313 = vpack.c.bf16 %v1292, %v1292
        %1315 = vrot.lane.b32.xlu0 %v1313, 24
        %v1316 = vpop.permute.xlu0 %1315
        %vm1318 = vcmask 257216
        %1319 = vst.msk [vmem:[#allocation4] sm:$0xf] %vm1318, %v1316
        %v1320 = vpack.c.bf16 %v1310, %v1310
        %1322 = vrot.lane.b32.xlu0 %v1320, 24
        %v1323 = vpop.permute.xlu0 %1322
        %1325 = vst.msk [vmem:[#allocation4 + $0x4] sm:$0xf] %vm1318, %v1323
        %v1326 = vld [vmem:[#allocation4] sm:$0xf]
        %v1327 = vld [vmem:[#allocation4 + $0x4] sm:$0xf]
        %v1328 = vld [vmem:[#allocation16] sm:$0xf]
        %v1329 = vld [vmem:[#allocation16 + $0x4] sm:$0xf]
        %v1330 = vld [vmem:[#allocation16 + $0x8] sm:$0xf]
        %v1331 = vld [vmem:[#allocation16 + $0xc] sm:$0xf]
        %v1334 = vunpack.c.l.b16 %v1326
        %v1335 = vunpack.c.l.b16 %v1327
        %v1336 = vpack.c.b16 %v1335, %v1334
        %v1341 = vunpack.c.l.b16 %v1328
        %v1342 = vunpack.c.l.b16 %v1329
        %v1343 = vunpack.c.l.b16 %v1330
        %v1344 = vunpack.c.l.b16 %v1331
        %v1345 = vpack.c.b16 %v1342, %v1341
        %v1346 = vpack.c.b16 %v1344, %v1343
        %v1350 = vsel %vm677, %v1336, 0
        %1352 = vmatpush.bf16.msra.mxu0 0
        %1353 = vmatpush.bf16.msra.mxu0 0
        %1354 = vmatpush.bf16.msra.mxu0 0
        %1355 = vmatpush.bf16.msra.mxu0 0
        %1356 = vmatpush.bf16.msra.mxu0 0
        %1357 = vmatpush.bf16.msra.mxu0 0
        %1358 = vmatpush.bf16.msra.mxu0 %v1346
        %1359 = vmatpush.bf16.msra.mxu0 %v1345
        %1360 = vmatmul.bf16.gmra.mxu0 %v1350
        %v1361 = vpop.f32.mrf.mxu0
        %v1362 = vadd.f32 0.0, %v1361
        %v1363 = vpop.f32.mrf.mxu0
        %v1364 = vadd.f32 0.0, %v1363
        %1365 = vdwg.mxu0
        %1366 = vst.msk [vmem:[%s495] sm:$0xff] %vm677, %v1362
        %1367 = vst.msk [vmem:[%s502] sm:$0xff] %vm677, %v1364
        %s1368 = sand.u32 %s220, 1
        %s1369 = scalar_lea.sflag [#allocation7], %s1368
        %s1370 = sand.u32 %s220, 1
        %s1371 = smul.addr %s1370, 8
        %s1372 = scalar_lea.vmem [#allocation17], %s1371
        %s1373 = sand.u32 %s248, 1
        %s1374 = scalar_lea.sflag [#allocation19], %s1373
        %s1375 = sand.u32 %s248, 1
        %s1376 = smul.addr %s1375, 8
        %s1377 = scalar_lea.vmem [#allocation18], %s1376
        // Predicated region
        $region81: #{tpu_custom_call.1} parent=47 // pred_check
          %p1378 = pneg %p230
        $region82: #{tpu_custom_call.1} parent=47 // pred_check_branch
          %1380 = sbr.rel (%p1378) target = $region84
        $region83: #{tpu_custom_call.1} parent=47 // pred_region
          %1382 = vsyncadd %s1369, 0
          %s1383 = sadd.s32 %s39, %s38
          %s1384 = smul.addr %s1383, 8
          %s1385 = scalar_lea.hbm %s7, %s1384
          %s1387 = sshll.u32 %s1372, 4
          %s1388 = int_to_ptr.vmem [resolvable:$true] %s1387
          %s1389 = sshll.u32 %s1385, 4
          %s1390 = int_to_ptr.hbm [resolvable:$true] %s1389
          %1392 = dma.vmem_to_hbm [thread:$0]  %s1388, 128, %s1390, %s1369
        $region84: #{tpu_custom_call.1} parent=47 // pred_fallthru
          _
        // Predicated region
        $region85: #{tpu_custom_call.1} parent=47 // pred_check
          %p1393 = pneg %p258
        $region86: #{tpu_custom_call.1} parent=47 // pred_check_branch
          %1395 = sbr.rel (%p1393) target = $region88
        $region87: #{tpu_custom_call.1} parent=47 // pred_region
          %1397 = vsyncadd %s1374, 0
          %s1398 = sadd.s32 %s39, %s38
          %s1399 = smul.addr %s1398, 8
          %s1400 = scalar_lea.hbm %s8, %s1399
          %s1402 = sshll.u32 %s1377, 4
          %s1403 = int_to_ptr.vmem [resolvable:$true] %s1402
          %s1404 = sshll.u32 %s1400, 4
          %s1405 = int_to_ptr.hbm [resolvable:$true] %s1404
          %1407 = dma.vmem_to_hbm [thread:$0]  %s1403, 128, %s1405, %s1374
        $region88: #{tpu_custom_call.1} parent=47 // pred_fallthru
          _
      $region48: #{tpu_custom_call.1} parent=5 // pred_fallthru
        _
      %p1408 = scmp.le.s32.totalorder 2, %s29
      // Predicated region
      $region89: #{tpu_custom_call.1} parent=5 // pred_check
        %p1409 = pneg %p1408
      $region90: #{tpu_custom_call.1} parent=5 // pred_check_branch
        %1411 = sbr.rel (%p1409) target = $region92
      $region91: #{tpu_custom_call.1} parent=5 // pred_region
        %s1412 = ssub.s32 %s29, 2
        // Predicated region
        $region93: #{tpu_custom_call.1} parent=91 // pred_check
          %p1413 = pneg %p236
        $region94: #{tpu_custom_call.1} parent=91 // pred_check_branch
          %1415 = sbr.rel (%p1413) target = $region96
        $region95: #{tpu_custom_call.1} parent=91 // pred_region
          %s1416 = sand.u32 %s221, 1
          %s1417 = scalar_lea.sflag [#allocation7], %s1416
          %s1418 = sand.u32 %s221, 1
          %s1419 = smul.addr %s1418, 8
          %s1420 = scalar_lea.vmem [#allocation17], %s1419
          %1422 = dma.done %s1417, 128
        $region96: #{tpu_custom_call.1} parent=91 // pred_fallthru
          _
        // Predicated region
        $region97: #{tpu_custom_call.1} parent=91 // pred_check
          %p1423 = pneg %p264
        $region98: #{tpu_custom_call.1} parent=91 // pred_check_branch
          %1425 = sbr.rel (%p1423) target = $region100
        $region99: #{tpu_custom_call.1} parent=91 // pred_region
          %s1426 = sand.u32 %s249, 1
          %s1427 = scalar_lea.sflag [#allocation19], %s1426
          %s1428 = sand.u32 %s249, 1
          %s1429 = smul.addr %s1428, 8
          %s1430 = scalar_lea.vmem [#allocation18], %s1429
          %1432 = dma.done %s1427, 128
        $region100: #{tpu_custom_call.1} parent=91 // pred_fallthru
          _
      $region92: #{tpu_custom_call.1} parent=5 // pred_fallthru
        _
    $region6: #{tpu_custom_call.1} parent=1 // loop_footer
      %s33 = sadd.s32 1, %s29
    $region7: #{tpu_custom_call.1} parent=1 // loop_footer_branch
      %28 = sbr.rel target = $region3
    $region8: #{tpu_custom_call.1} parent=1 // loop_exit
      _
    %1433 = vsyncpa [#allocation6], 1
    %s1434 = scalar_lea.sflag [#allocation6], 1
    %1435 = vsyncpa %s1434, 1
    %1436 = vsyncpa [#allocation9], 1
    %s1437 = scalar_lea.sflag [#allocation9], 1
    %1438 = vsyncpa %s1437, 1
    %1439 = vsyncpa [#allocation12], 1
    %1440 = vsyncpa [#allocation15], 1
    %1441 = vsyncpa [#allocation7], 1
    %s1442 = scalar_lea.sflag [#allocation7], 1
    %1443 = vsyncpa %s1442, 1
    %1444 = vsyncpa [#allocation19], 1
    %s1445 = scalar_lea.sflag [#allocation19], 1
    %1446 = vsyncpa %s1445, 1

</llo_original>
